<compile_context>
chip_gen: v5e
topology: v5e:2x2
jax: 0.10.0
libtpu: 0.0.40
codegen_flags: <defaults>
</compile_context>

<pallas_src>
import functools
import math

import jax
import jax.numpy as jnp
from jax.experimental import pallas as pl
from jax.experimental.pallas import tpu as pltpu


_VMEM_LIMIT = 32 * 1024 * 1024      # safe scoped limit on v5e / v6e / v7x
_ROW_TILE_CAP_PIX = 8192            # output pixels per conv row-tile
_EPS = 1e-5


# ---------------------------------------------------------------------------
# Pallas kernels
# ---------------------------------------------------------------------------
def _conv3x3_moments_kernel(x0_ref, x1_ref, x2_ref, w_ref, y_ref, mom_ref):
    """3x3 conv (pad=1) for one row-tile of one batch element + running
    per-channel [sum, sum_sq] for the later InstanceNorm pass.

    x*_ref : (1, TH, W+2, Cin) bf16  -- padded input, pre-shifted by dy rows.
    w_ref  : (9, Cin, Cout)    bf16  -- tap-major 3x3 weights (no bias: it is
                                        exactly cancelled by InstanceNorm).
    y_ref  : (1, TH*W, Cout)   f32   -- un-normalized conv output tile.
    mom_ref: (1, 2, Cout)      f32   -- moments, accumulated over row tiles.
    """
    th, wp, cin = x0_ref.shape[1], x0_ref.shape[2], x0_ref.shape[3]
    w_out = wp - 2
    cout = y_ref.shape[2]

    acc = jnp.zeros((th * w_out, cout), jnp.float32)
    slabs = (x0_ref, x1_ref, x2_ref)
    for dy in range(3):                                 # unrolled (static)
        xs = slabs[dy][0]                               # (TH, W+2, Cin)
        for dx in range(3):
            xm = xs[:, dx:dx + w_out, :].reshape(th * w_out, cin)
            acc = acc + jnp.dot(xm, w_ref[3 * dy + dx],
                                preferred_element_type=jnp.float32)

    y_ref[0] = acc

    s = jnp.sum(acc, axis=0, keepdims=True)             # (1, Cout)
    ss = jnp.sum(acc * acc, axis=0, keepdims=True)      # (1, Cout)
    mom = jnp.concatenate([s, ss], axis=0)[None]        # (1, 2, Cout)

    @pl.when(pl.program_id(1) == 0)
    def _():
        mom_ref[...] = jnp.zeros_like(mom_ref)

    mom_ref[...] += mom


def _in_relu_kernel(y_ref, mom_ref, o_ref, *, inv_n):
    """InstanceNorm (no affine, biased var, eps=1e-5) + ReLU on one tile."""
    m = mom_ref[0]                          # (2, Cout) f32
    mean = m[0:1] * inv_n                   # (1, Cout)
    var = m[1:2] * inv_n - mean * mean      # E[x^2] - mean^2
    scale = jax.lax.rsqrt(var + _EPS)
    o_ref[0] = jnp.maximum((y_ref[0] - mean) * scale, 0.0)


def _head_kernel(x_ref, w_ref, b_ref, o_ref):
    """Fused three-1x1-conv head: single (pix, Cin) @ (Cin, Cout) + bias."""
    o_ref[0] = (jnp.dot(x_ref[0], w_ref[...],
                        preferred_element_type=jnp.float32) + b_ref[...])


# ---------------------------------------------------------------------------
# Tile pickers
# ---------------------------------------------------------------------------
def _pick_row_tile(h, w, cap_pix=_ROW_TILE_CAP_PIX):
    """Largest TH dividing H with TH*W <= cap and a store-friendly TH*W % 8 == 0."""
    if h * w <= cap_pix:
        return h
    for th in range(h, 0, -1):
        if h % th == 0 and th * w <= cap_pix and (th * w) % 8 == 0:
            return th
    return h        # fallback: single tile (correct; just bigger VMEM block)


def _pick_pixel_tile(hw, cap_pix=32768):
    if hw <= cap_pix:
        return hw
    start = cap_pix - cap_pix % 8
    for tp in range(start, 0, -8):
        if hw % tp == 0:
            return tp
    return hw


# ---------------------------------------------------------------------------
# Pallas wrappers
# ---------------------------------------------------------------------------
def conv3x3_in_relu(x, wk, *, row_cap_pix=_ROW_TILE_CAP_PIX):
    """Conv2d(3x3, pad=1, bias dropped) -> InstanceNorm2d -> ReLU.

    x : (N, H, W, Cin) f32 NHWC.   wk : (9, Cin, Cout) bf16 tap-major weights.
    """
    n, h, w, cin = x.shape
    cout = wk.shape[-1]
    wp = w + 2
    th = _pick_row_tile(h, w, row_cap_pix)
    t = h // th
    tp = th * w
    hw = h * w

    # dy-pre-shifted padded slabs: 3x HBM read instead of 9x im2col.
    xp = jnp.pad(x, ((0, 0), (1, 1), (1, 1), (0, 0))).astype(jnp.bfloat16)
    x0, x1, x2 = xp[:, 0:h], xp[:, 1:h + 1], xp[:, 2:h + 2]   # (N, H, W+2, Cin)

    slab_spec = pl.BlockSpec((1, th, wp, cin), lambda ni, ti: (ni, ti, 0, 0))

    # Pass 1: conv + per-channel moment accumulation across row tiles.
    y, mom = pl.pallas_call(
        _conv3x3_moments_kernel,
        out_shape=(jax.ShapeDtypeStruct((n, hw, cout), jnp.float32),
                   jax.ShapeDtypeStruct((n, 2, cout), jnp.float32)),
        grid=(n, t),
        in_specs=[slab_spec, slab_spec, slab_spec,
                  pl.BlockSpec((9, cin, cout), lambda ni, ti: (0, 0, 0))],
        out_specs=[pl.BlockSpec((1, tp, cout), lambda ni, ti: (ni, ti, 0)),
                   pl.BlockSpec((1, 2, cout), lambda ni, ti: (ni, 0, 0))],
        compiler_params=pltpu.CompilerParams(
            dimension_semantics=("parallel", "arbitrary"),
            vmem_limit_bytes=_VMEM_LIMIT),
    )(x0, x1, x2, wk)

    # Pass 2: InstanceNorm + ReLU from the finalized moments (fully parallel).
    out = pl.pallas_call(
        functools.partial(_in_relu_kernel, inv_n=1.0 / hw),
        out_shape=jax.ShapeDtypeStruct((n, hw, cout), jnp.float32),
        grid=(n, t),
        in_specs=[pl.BlockSpec((1, tp, cout), lambda ni, ti: (ni, ti, 0)),
                  pl.BlockSpec((1, 2, cout), lambda ni, ti: (ni, 0, 0))],
        out_specs=pl.BlockSpec((1, tp, cout), lambda ni, ti: (ni, ti, 0)),
        compiler_params=pltpu.CompilerParams(
            dimension_semantics=("parallel", "parallel"),
            vmem_limit_bytes=_VMEM_LIMIT),
    )(y, mom)
    return out.reshape(n, h, w, cout)


def head_1x1(x, w_fused, b_fused):
    """Three chained 1x1 convs collapsed into one matmul (exact identity)."""
    n, h, w, cin = x.shape
    cout = w_fused.shape[-1]
    hw = h * w
    tp = _pick_pixel_tile(hw)
    xf = x.reshape(n, hw, cin).astype(jnp.bfloat16)
    out = pl.pallas_call(
        _head_kernel,
        out_shape=jax.ShapeDtypeStruct((n, hw, cout), jnp.float32),
        grid=(n, hw // tp),
        in_specs=[pl.BlockSpec((1, tp, cin), lambda ni, ti: (ni, ti, 0)),
                  pl.BlockSpec((cin, cout), lambda ni, ti: (0, 0)),
                  pl.BlockSpec((1, cout), lambda ni, ti: (0, 0))],
        out_specs=pl.BlockSpec((1, tp, cout), lambda ni, ti: (ni, ti, 0)),
        compiler_params=pltpu.CompilerParams(
            dimension_semantics=("parallel", "parallel"),
            vmem_limit_bytes=_VMEM_LIMIT),
    )(xf, w_fused, b_fused)
    return out.reshape(n, h, w, cout)


# ---------------------------------------------------------------------------
# Plain-JAX glue (layout / sampling only)
# ---------------------------------------------------------------------------
def resize_bilinear(x, out_h, out_w):
    """Bilinear resize matching PyTorch interpolate(align_corners=False). NHWC."""
    _, H, W, _ = x.shape

    def lin(osz, isz):
        i = jnp.arange(osz, dtype=jnp.float32)
        src = jnp.clip((i + 0.5) * (isz / osz) - 0.5, 0.0, isz - 1.0)
        i0 = jnp.floor(src).astype(jnp.int32)
        i1 = jnp.minimum(i0 + 1, isz - 1)
        w1 = src - i0.astype(jnp.float32)
        return i0, i1, 1.0 - w1, w1

    h0, h1, wh0, wh1 = lin(out_h, H)
    w0, w1i, ww0, ww1 = lin(out_w, W)
    xr = (x[:, h0, :, :] * wh0[None, :, None, None]
          + x[:, h1, :, :] * wh1[None, :, None, None])
    xc = (xr[:, :, w0, :] * ww0[None, None, :, None]
          + xr[:, :, w1i, :] * ww1[None, None, :, None])
    return xc


def maxpool2(x):
    N, H, W, C = x.shape
    return x.reshape(N, H // 2, 2, W // 2, 2, C).max(axis=(2, 4))


# ---------------------------------------------------------------------------
# Parameters (deterministic, PyTorch-Conv2d-style uniform init), pre-packed
# into kernel-ready layouts (tap-major bf16 3x3 weights, fused head).
# ---------------------------------------------------------------------------
def _make_conv(key, cin, cout, k):
    wk, bk = jax.random.split(key)
    bound = 1.0 / math.sqrt(cin * k * k)
    w = jax.random.uniform(wk, (k, k, cin, cout), jnp.float32, -bound, bound)
    b = jax.random.uniform(bk, (cout,), jnp.float32, -bound, bound)
    return w, b


def _pack3x3(w):
    # (3,3,Cin,Cout) HWIO -> (9, Cin, Cout) tap-major, bf16 MXU operand.
    return w.reshape(9, w.shape[2], w.shape[3]).astype(jnp.bfloat16)


def init_unet_params(key, in_chans, out_chans, chans, num_pool_layers):
    state = {"key": key}

    def nk():
        state["key"], sub = jax.random.split(state["key"])
        return sub

    def convblock(ci, co):        # ConvBlock: two conv-IN-relu stages
        w1, _b1 = _make_conv(nk(), ci, co, 3)   # conv bias is a mathematical
        w2, _b2 = _make_conv(nk(), co, co, 3)   # no-op before affine-less IN
        return {"w1k": _pack3x3(w1), "w2k": _pack3x3(w2)}

    def convblock1(ci, co):       # ConvBlock2X_to_X: one conv-IN-relu stage
        w, _b = _make_conv(nk(), ci, co, 3)
        return {"wk": _pack3x3(w)}

    params = {"down": [], "up": []}
    params["down"].append({"conv1": convblock(in_chans, chans),
                           "conv2": convblock1(chans + 32, chans)})
    ch = chans
    for _ in range(num_pool_layers - 1):
        params["down"].append({"conv1": convblock(ch, ch * 2),
                               "conv2": convblock1(ch * 2 + 32, ch * 2)})
        ch *= 2
    params["bottleneck"] = {"conv1": convblock(ch, ch),
                            "conv2": convblock1(ch + 32, ch)}
    for _ in range(num_pool_layers - 1):
        params["up"].append({"conv1": convblock(ch * 2, ch // 2),
                             "conv2": convblock1(ch // 2 + 32, ch // 2)})
        ch //= 2
    params["up"].append({"conv1": convblock(ch * 2, ch),
                         "conv2": convblock1(ch + 32, ch)})

    # Head: three 1x1 convs fused into a single matmul (exact: no nonlinearity).
    w1, b1 = _make_conv(nk(), ch, ch // 2, 1)
    w2, b2 = _make_conv(nk(), ch // 2, out_chans, 1)
    w3, b3 = _make_conv(nk(), out_chans, out_chans, 1)
    m1 = w1.reshape(ch, ch // 2)
    m2 = w2.reshape(ch // 2, out_chans)
    m3 = w3.reshape(out_chans, out_chans)
    wf = m1 @ m2 @ m3
    bf = (b1 @ m2 + b2) @ m3 + b3
    params["head"] = {"w": wf.astype(jnp.bfloat16),
                      "b": bf.reshape(1, out_chans).astype(jnp.float32)}
    return params


# ---------------------------------------------------------------------------
# Forward pass (mirrors UnetModelAssistEverywhere.forward)
# ---------------------------------------------------------------------------
def _conv_block(x, p):
    intout = conv3x3_in_relu(x, p["w1k"])
    output = conv3x3_in_relu(intout, p["w2k"])
    return intout, output


def unet_forward(params, x_nchw, feat_nchw):
    x = jnp.transpose(x_nchw, (0, 2, 3, 1)).astype(jnp.float32)
    feat = jnp.transpose(feat_nchw, (0, 2, 3, 1)).astype(jnp.float32)

    num_pool = len(params["down"])
    assert x.shape[1] % (2 ** num_pool) == 0 and x.shape[2] % (2 ** num_pool) == 0, \
        "spatial dims must be divisible by 2**num_pool_layers"

    feat_cache = {}

    def rfeat(h, w):                  # encoder & decoder reuse the same sizes
        if (h, w) not in feat_cache:
            feat_cache[(h, w)] = resize_bilinear(feat, h, w)
        return feat_cache[(h, w)]

    stack = []
    out = x
    for blk in params["down"]:
        _, out = _conv_block(out, blk["conv1"])
        rf = rfeat(out.shape[1], out.shape[2])
        out = conv3x3_in_relu(jnp.concatenate([rf, out], axis=-1),
                              blk["conv2"]["wk"])
        stack.append(out)
        out = maxpool2(out)

    _, out = _conv_block(out, params["bottleneck"]["conv1"])
    rf = rfeat(out.shape[1], out.shape[2])
    out = conv3x3_in_relu(jnp.concatenate([rf, out], axis=-1),
                          params["bottleneck"]["conv2"]["wk"])

    for blk in params["up"]:
        out = resize_bilinear(out, out.shape[1] * 2, out.shape[2] * 2)
        out = jnp.concatenate([out, stack.pop()], axis=-1)
        _, out = _conv_block(out, blk["conv1"])
        rf = rfeat(out.shape[1], out.shape[2])
        out = conv3x3_in_relu(jnp.concatenate([rf, out], axis=-1),
                              blk["conv2"]["wk"])

    out = head_1x1(out, params["head"]["w"], params["head"]["b"])
    return jnp.transpose(out, (0, 3, 1, 2))   # back to NCHW


# ---------------------------------------------------------------------------
def _conv_in_relu_ref(x, w):
    """Pure-XLA reference for one conv->IN->ReLU stage (f32)."""
    y = jax.lax.conv_general_dilated(
        x, w, window_strides=(1, 1), padding="SAME",
        dimension_numbers=("NHWC", "HWIO", "NHWC"))
    mean = y.mean(axis=(1, 2), keepdims=True)
    var = ((y - mean) ** 2).mean(axis=(1, 2), keepdims=True)
    return jnp.maximum((y - mean) * jax.lax.rsqrt(var + _EPS), 0.0)


if __name__ == "__main__":
    key = jax.random.PRNGKey(0)
    kp, kx, kf, kcx, kcw = jax.random.split(key, 5)

    IN_CHANS, OUT_CHANS, CHANS, NUM_POOL = 2, 2, 8, 2
    N, H, W = 2, 16, 16

    # Targeted check of the tiled conv + moment-accumulation + IN + ReLU path
    # (row_cap forces 4 row tiles so the cross-tile accumulation is exercised).
    xc = jax.random.normal(kcx, (2, 16, 16, 5), jnp.float32)
    wc, _ = _make_conv(kcw, 5, 8, 3)
    got = conv3x3_in_relu(xc, _pack3x3(wc), row_cap_pix=64)
    ref = _conv_in_relu_ref(xc, wc)
    err = float(jnp.max(jnp.abs(got - ref)))
    assert err < 8e-2, f"conv pipeline mismatch: max abs err {err}"

    # Full forward pass.
    params = init_unet_params(kp, IN_CHANS, OUT_CHANS, CHANS, NUM_POOL)
    x = jax.random.normal(kx, (N, IN_CHANS, H, W), jnp.float32)
    feat = jax.random.normal(kf, (N, 32, 8, 8), jnp.float32)   # assist features

    fwd = jax.jit(unet_forward)
    out = jax.block_until_ready(fwd(params, x, feat))

    assert out.shape == (N, OUT_CHANS, H, W), out.shape
    assert bool(jnp.all(jnp.isfinite(out)))
    print("KERNEL_OK")
</pallas_src>

<mosaic_0001>
module attributes {stable_mosaic.version = 11 : i64} {
  func.func @_conv3x3_moments_kernel(%arg0: i32, %arg1: i32, %arg2: memref<1x4x18x5xbf16, #tpu.memory_space<vmem>>, %arg3: memref<1x4x18x5xbf16, #tpu.memory_space<vmem>>, %arg4: memref<1x4x18x5xbf16, #tpu.memory_space<vmem>>, %arg5: memref<9x5x8xbf16, #tpu.memory_space<vmem>>, %arg6: memref<1x64x8xf32, #tpu.memory_space<vmem>>, %arg7: memref<1x2x8xf32, #tpu.memory_space<vmem>>) attributes {dimension_semantics = [#tpu.dimension_semantics<parallel>, #tpu.dimension_semantics<arbitrary>], iteration_bounds = array<i64: 2, 4>, scalar_prefetch = 0 : i64, scratch_operands = 0 : i64, tpu.core_type = #tpu.core_type<tc>, window_params = [{transform_indices = @transform_0, window_bounds = array<i64: 1, 4, 18, 5>}, {transform_indices = @transform_1, window_bounds = array<i64: 1, 4, 18, 5>}, {transform_indices = @transform_2, window_bounds = array<i64: 1, 4, 18, 5>}, {pipeline_mode = #tpu.pipeline_mode<synchronous>, transform_indices = @transform_3, window_bounds = array<i64: 9, 5, 8>}, {transform_indices = @transform_4, window_bounds = array<i64: 1, 64, 8>}, {transform_indices = @transform_5, window_bounds = array<i64: 1, 2, 8>}]} {
    %cst = arith.constant 0.000000e+00 : f32
    %0 = vector.broadcast %cst : f32 to vector<64x8xf32>
    %c0 = arith.constant 0 : index
    %c0_0 = arith.constant 0 : index
    %c0_1 = arith.constant 0 : index
    %c0_2 = arith.constant 0 : index
    %1 = vector.load %arg2[%c0, %c0_0, %c0_1, %c0_2] : memref<1x4x18x5xbf16, #tpu.memory_space<vmem>>, vector<1x4x18x5xbf16>
    %2 = vector.shape_cast %1 : vector<1x4x18x5xbf16> to vector<4x18x5xbf16>
    %3 = vector.extract_strided_slice %2 {offsets = [0, 0, 0], sizes = [4, 16, 5], strides = [1, 1, 1]} : vector<4x18x5xbf16> to vector<4x16x5xbf16>
    %4 = vector.shape_cast %3 : vector<4x16x5xbf16> to vector<64x5xbf16>
    %c0_3 = arith.constant 0 : index
    %c0_4 = arith.constant 0 : index
    %c0_5 = arith.constant 0 : index
    %5 = vector.load %arg5[%c0_3, %c0_4, %c0_5] : memref<9x5x8xbf16, #tpu.memory_space<vmem>>, vector<1x5x8xbf16>
    %6 = vector.shape_cast %5 : vector<1x5x8xbf16> to vector<5x8xbf16>
    %cst_6 = arith.constant dense<0.000000e+00> : vector<64x8xf32>
    %7 = tpu.matmul %4, %6, %cst_6 {dimension_numbers = #tpu.dot_dimension_numbers<[1], [0], [0], [1], [0, 0, 1, 1], [], []>} : vector<64x5xbf16>, vector<5x8xbf16>, vector<64x8xf32> -> vector<64x8xf32>
    %8 = arith.addf %0, %7 : vector<64x8xf32>
    %9 = vector.extract_strided_slice %2 {offsets = [0, 1, 0], sizes = [4, 16, 5], strides = [1, 1, 1]} : vector<4x18x5xbf16> to vector<4x16x5xbf16>
    %10 = vector.shape_cast %9 : vector<4x16x5xbf16> to vector<64x5xbf16>
    %c1 = arith.constant 1 : index
    %c0_7 = arith.constant 0 : index
    %c0_8 = arith.constant 0 : index
    %11 = vector.load %arg5[%c1, %c0_7, %c0_8] : memref<9x5x8xbf16, #tpu.memory_space<vmem>>, vector<1x5x8xbf16>
    %12 = vector.shape_cast %11 : vector<1x5x8xbf16> to vector<5x8xbf16>
    %cst_9 = arith.constant dense<0.000000e+00> : vector<64x8xf32>
    %13 = tpu.matmul %10, %12, %cst_9 {dimension_numbers = #tpu.dot_dimension_numbers<[1], [0], [0], [1], [0, 0, 1, 1], [], []>} : vector<64x5xbf16>, vector<5x8xbf16>, vector<64x8xf32> -> vector<64x8xf32>
    %14 = arith.addf %8, %13 : vector<64x8xf32>
    %15 = vector.extract_strided_slice %2 {offsets = [0, 2, 0], sizes = [4, 16, 5], strides = [1, 1, 1]} : vector<4x18x5xbf16> to vector<4x16x5xbf16>
    %16 = vector.shape_cast %15 : vector<4x16x5xbf16> to vector<64x5xbf16>
    %c2 = arith.constant 2 : index
    %c0_10 = arith.constant 0 : index
    %c0_11 = arith.constant 0 : index
    %17 = vector.load %arg5[%c2, %c0_10, %c0_11] : memref<9x5x8xbf16, #tpu.memory_space<vmem>>, vector<1x5x8xbf16>
    %18 = vector.shape_cast %17 : vector<1x5x8xbf16> to vector<5x8xbf16>
    %cst_12 = arith.constant dense<0.000000e+00> : vector<64x8xf32>
    %19 = tpu.matmul %16, %18, %cst_12 {dimension_numbers = #tpu.dot_dimension_numbers<[1], [0], [0], [1], [0, 0, 1, 1], [], []>} : vector<64x5xbf16>, vector<5x8xbf16>, vector<64x8xf32> -> vector<64x8xf32>
    %20 = arith.addf %14, %19 : vector<64x8xf32>
    %c0_13 = arith.constant 0 : index
    %c0_14 = arith.constant 0 : index
    %c0_15 = arith.constant 0 : index
    %c0_16 = arith.constant 0 : index
    %21 = vector.load %arg3[%c0_13, %c0_14, %c0_15, %c0_16] : memref<1x4x18x5xbf16, #tpu.memory_space<vmem>>, vector<1x4x18x5xbf16>
    %22 = vector.shape_cast %21 : vector<1x4x18x5xbf16> to vector<4x18x5xbf16>
    %23 = vector.extract_strided_slice %22 {offsets = [0, 0, 0], sizes = [4, 16, 5], strides = [1, 1, 1]} : vector<4x18x5xbf16> to vector<4x16x5xbf16>
    %24 = vector.shape_cast %23 : vector<4x16x5xbf16> to vector<64x5xbf16>
    %c3 = arith.constant 3 : index
    %c0_17 = arith.constant 0 : index
    %c0_18 = arith.constant 0 : index
    %25 = vector.load %arg5[%c3, %c0_17, %c0_18] : memref<9x5x8xbf16, #tpu.memory_space<vmem>>, vector<1x5x8xbf16>
    %26 = vector.shape_cast %25 : vector<1x5x8xbf16> to vector<5x8xbf16>
    %cst_19 = arith.constant dense<0.000000e+00> : vector<64x8xf32>
    %27 = tpu.matmul %24, %26, %cst_19 {dimension_numbers = #tpu.dot_dimension_numbers<[1], [0], [0], [1], [0, 0, 1, 1], [], []>} : vector<64x5xbf16>, vector<5x8xbf16>, vector<64x8xf32> -> vector<64x8xf32>
    %28 = arith.addf %20, %27 : vector<64x8xf32>
    %29 = vector.extract_strided_slice %22 {offsets = [0, 1, 0], sizes = [4, 16, 5], strides = [1, 1, 1]} : vector<4x18x5xbf16> to vector<4x16x5xbf16>
    %30 = vector.shape_cast %29 : vector<4x16x5xbf16> to vector<64x5xbf16>
    %c4 = arith.constant 4 : index
    %c0_20 = arith.constant 0 : index
    %c0_21 = arith.constant 0 : index
    %31 = vector.load %arg5[%c4, %c0_20, %c0_21] : memref<9x5x8xbf16, #tpu.memory_space<vmem>>, vector<1x5x8xbf16>
    %32 = vector.shape_cast %31 : vector<1x5x8xbf16> to vector<5x8xbf16>
    %cst_22 = arith.constant dense<0.000000e+00> : vector<64x8xf32>
    %33 = tpu.matmul %30, %32, %cst_22 {dimension_numbers = #tpu.dot_dimension_numbers<[1], [0], [0], [1], [0, 0, 1, 1], [], []>} : vector<64x5xbf16>, vector<5x8xbf16>, vector<64x8xf32> -> vector<64x8xf32>
    %34 = arith.addf %28, %33 : vector<64x8xf32>
    %35 = vector.extract_strided_slice %22 {offsets = [0, 2, 0], sizes = [4, 16, 5], strides = [1, 1, 1]} : vector<4x18x5xbf16> to vector<4x16x5xbf16>
    %36 = vector.shape_cast %35 : vector<4x16x5xbf16> to vector<64x5xbf16>
    %c5 = arith.constant 5 : index
    %c0_23 = arith.constant 0 : index
    %c0_24 = arith.constant 0 : index
    %37 = vector.load %arg5[%c5, %c0_23, %c0_24] : memref<9x5x8xbf16, #tpu.memory_space<vmem>>, vector<1x5x8xbf16>
    %38 = vector.shape_cast %37 : vector<1x5x8xbf16> to vector<5x8xbf16>
    %cst_25 = arith.constant dense<0.000000e+00> : vector<64x8xf32>
    %39 = tpu.matmul %36, %38, %cst_25 {dimension_numbers = #tpu.dot_dimension_numbers<[1], [0], [0], [1], [0, 0, 1, 1], [], []>} : vector<64x5xbf16>, vector<5x8xbf16>, vector<64x8xf32> -> vector<64x8xf32>
    %40 = arith.addf %34, %39 : vector<64x8xf32>
    %c0_26 = arith.constant 0 : index
    %c0_27 = arith.constant 0 : index
    %c0_28 = arith.constant 0 : index
    %c0_29 = arith.constant 0 : index
    %41 = vector.load %arg4[%c0_26, %c0_27, %c0_28, %c0_29] : memref<1x4x18x5xbf16, #tpu.memory_space<vmem>>, vector<1x4x18x5xbf16>
    %42 = vector.shape_cast %41 : vector<1x4x18x5xbf16> to vector<4x18x5xbf16>
    %43 = vector.extract_strided_slice %42 {offsets = [0, 0, 0], sizes = [4, 16, 5], strides = [1, 1, 1]} : vector<4x18x5xbf16> to vector<4x16x5xbf16>
    %44 = vector.shape_cast %43 : vector<4x16x5xbf16> to vector<64x5xbf16>
    %c6 = arith.constant 6 : index
    %c0_30 = arith.constant 0 : index
    %c0_31 = arith.constant 0 : index
    %45 = vector.load %arg5[%c6, %c0_30, %c0_31] : memref<9x5x8xbf16, #tpu.memory_space<vmem>>, vector<1x5x8xbf16>
    %46 = vector.shape_cast %45 : vector<1x5x8xbf16> to vector<5x8xbf16>
    %cst_32 = arith.constant dense<0.000000e+00> : vector<64x8xf32>
    %47 = tpu.matmul %44, %46, %cst_32 {dimension_numbers = #tpu.dot_dimension_numbers<[1], [0], [0], [1], [0, 0, 1, 1], [], []>} : vector<64x5xbf16>, vector<5x8xbf16>, vector<64x8xf32> -> vector<64x8xf32>
    %48 = arith.addf %40, %47 : vector<64x8xf32>
    %49 = vector.extract_strided_slice %42 {offsets = [0, 1, 0], sizes = [4, 16, 5], strides = [1, 1, 1]} : vector<4x18x5xbf16> to vector<4x16x5xbf16>
    %50 = vector.shape_cast %49 : vector<4x16x5xbf16> to vector<64x5xbf16>
    %c7 = arith.constant 7 : index
    %c0_33 = arith.constant 0 : index
    %c0_34 = arith.constant 0 : index
    %51 = vector.load %arg5[%c7, %c0_33, %c0_34] : memref<9x5x8xbf16, #tpu.memory_space<vmem>>, vector<1x5x8xbf16>
    %52 = vector.shape_cast %51 : vector<1x5x8xbf16> to vector<5x8xbf16>
    %cst_35 = arith.constant dense<0.000000e+00> : vector<64x8xf32>
    %53 = tpu.matmul %50, %52, %cst_35 {dimension_numbers = #tpu.dot_dimension_numbers<[1], [0], [0], [1], [0, 0, 1, 1], [], []>} : vector<64x5xbf16>, vector<5x8xbf16>, vector<64x8xf32> -> vector<64x8xf32>
    %54 = arith.addf %48, %53 : vector<64x8xf32>
    %55 = vector.extract_strided_slice %42 {offsets = [0, 2, 0], sizes = [4, 16, 5], strides = [1, 1, 1]} : vector<4x18x5xbf16> to vector<4x16x5xbf16>
    %56 = vector.shape_cast %55 : vector<4x16x5xbf16> to vector<64x5xbf16>
    %c8 = arith.constant 8 : index
    %c0_36 = arith.constant 0 : index
    %c0_37 = arith.constant 0 : index
    %57 = vector.load %arg5[%c8, %c0_36, %c0_37] : memref<9x5x8xbf16, #tpu.memory_space<vmem>>, vector<1x5x8xbf16>
    %58 = vector.shape_cast %57 : vector<1x5x8xbf16> to vector<5x8xbf16>
    %cst_38 = arith.constant dense<0.000000e+00> : vector<64x8xf32>
    %59 = tpu.matmul %56, %58, %cst_38 {dimension_numbers = #tpu.dot_dimension_numbers<[1], [0], [0], [1], [0, 0, 1, 1], [], []>} : vector<64x5xbf16>, vector<5x8xbf16>, vector<64x8xf32> -> vector<64x8xf32>
    %60 = arith.addf %54, %59 : vector<64x8xf32>
    %c0_39 = arith.constant 0 : index
    %c0_40 = arith.constant 0 : index
    %c0_41 = arith.constant 0 : index
    %61 = vector.load %arg6[%c0_39, %c0_40, %c0_41] : memref<1x64x8xf32, #tpu.memory_space<vmem>>, vector<1x64x8xf32>
    %62 = vector.shape_cast %61 : vector<1x64x8xf32> to vector<64x8xf32>
    %63 = vector.shape_cast %60 : vector<64x8xf32> to vector<1x64x8xf32>
    tpu.vector_store %arg6[%c0_39, %c0_40, %c0_41], %63 {strides = array<i32>} : memref<1x64x8xf32, #tpu.memory_space<vmem>>, vector<1x64x8xf32>,
    %cst_42 = arith.constant dense<0.000000e+00> : vector<8xf32>
    %64 = vector.multi_reduction <add>, %60, %cst_42 [0] : vector<64x8xf32> to vector<8xf32>
    %65 = vector.shape_cast %64 : vector<8xf32> to vector<1x8xf32>
    %66 = arith.mulf %60, %60 : vector<64x8xf32>
    %cst_43 = arith.constant dense<0.000000e+00> : vector<8xf32>
    %67 = vector.multi_reduction <add>, %66, %cst_43 [0] : vector<64x8xf32> to vector<8xf32>
    %68 = vector.shape_cast %67 : vector<8xf32> to vector<1x8xf32>
    %69 = tpu.concatenate %65, %68 in 0 : vector<1x8xf32>, vector<1x8xf32> -> vector<2x8xf32>
    %70 = vector.shape_cast %69 : vector<2x8xf32> to vector<1x2x8xf32>
    %c0_i32 = arith.constant 0 : i32
    %71 = arith.cmpi eq, %arg1, %c0_i32 : i32
    %72 = arith.extui %71 : i1 to i32
    %c0_i32_44 = arith.constant 0 : i32
    %73 = arith.cmpi ne, %72, %c0_i32_44 : i32
    scf.if %73 {
      %cst_51 = arith.constant 0.000000e+00 : f32
      %77 = vector.broadcast %cst_51 : f32 to vector<1x2x8xf32>
      %c0_52 = arith.constant 0 : index
      %c0_53 = arith.constant 0 : index
      %c0_54 = arith.constant 0 : index
      %78 = vector.load %arg7[%c0_52, %c0_53, %c0_54] : memref<1x2x8xf32, #tpu.memory_space<vmem>>, vector<1x2x8xf32>
      tpu.vector_store %arg7[%c0_52, %c0_53, %c0_54], %77 {strides = array<i32>} : memref<1x2x8xf32, #tpu.memory_space<vmem>>, vector<1x2x8xf32>,
    } else {
    }
    %c0_45 = arith.constant 0 : index
    %c0_46 = arith.constant 0 : index
    %c0_47 = arith.constant 0 : index
    %74 = vector.load %arg7[%c0_45, %c0_46, %c0_47] : memref<1x2x8xf32, #tpu.memory_space<vmem>>, vector<1x2x8xf32>
    %75 = arith.addf %74, %70 : vector<1x2x8xf32>
    %c0_48 = arith.constant 0 : index
    %c0_49 = arith.constant 0 : index
    %c0_50 = arith.constant 0 : index
    %76 = vector.load %arg7[%c0_48, %c0_49, %c0_50] : memref<1x2x8xf32, #tpu.memory_space<vmem>>, vector<1x2x8xf32>
    tpu.vector_store %arg7[%c0_48, %c0_49, %c0_50], %75 {strides = array<i32>} : memref<1x2x8xf32, #tpu.memory_space<vmem>>, vector<1x2x8xf32>,
    return
  }
  func.func @transform_0(%arg0: i32, %arg1: i32) -> (i32, i32, i32, i32) {
    %c0_i32 = arith.constant 0 : i32
    %c0_i32_0 = arith.constant 0 : i32
    %c0_i32_1 = arith.constant 0 : i32
    return %arg0, %arg1, %c0_i32, %c0_i32_0 : i32, i32, i32, i32
  }
  func.func @transform_1(%arg0: i32, %arg1: i32) -> (i32, i32, i32, i32) {
    %c0_i32 = arith.constant 0 : i32
    %c0_i32_0 = arith.constant 0 : i32
    %c0_i32_1 = arith.constant 0 : i32
    return %arg0, %arg1, %c0_i32, %c0_i32_0 : i32, i32, i32, i32
  }
  func.func @transform_2(%arg0: i32, %arg1: i32) -> (i32, i32, i32, i32) {
    %c0_i32 = arith.constant 0 : i32
    %c0_i32_0 = arith.constant 0 : i32
    %c0_i32_1 = arith.constant 0 : i32
    return %arg0, %arg1, %c0_i32, %c0_i32_0 : i32, i32, i32, i32
  }
  func.func @transform_3(%arg0: i32, %arg1: i32) -> (i32, i32, i32) {
    %c0_i32 = arith.constant 0 : i32
    %c0_i32_0 = arith.constant 0 : i32
    %c0_i32_1 = arith.constant 0 : i32
    %c0_i32_2 = arith.constant 0 : i32
    return %c0_i32, %c0_i32_0, %c0_i32_1 : i32, i32, i32
  }
  func.func @transform_4(%arg0: i32, %arg1: i32) -> (i32, i32, i32) {
    %c0_i32 = arith.constant 0 : i32
    %c0_i32_0 = arith.constant 0 : i32
    return %arg0, %arg1, %c0_i32 : i32, i32, i32
  }
  func.func @transform_5(%arg0: i32, %arg1: i32) -> (i32, i32, i32) {
    %c0_i32 = arith.constant 0 : i32
    %c0_i32_0 = arith.constant 0 : i32
    %c0_i32_1 = arith.constant 0 : i32
    return %arg0, %c0_i32, %c0_i32_0 : i32, i32, i32
  }
}

</mosaic_0001>

<llo_original>
// kernel: tpu_custom_call.1
$region0: #{tpu_custom_call.1}
  #allocation0 [shape = 'u32[]', space=smem, size = 0x4, offset = 0x4, fixed_abs, tag = 'smem constant byte address 0x4 - core index']
  #allocation1 [shape = 'u32[72,128]{1,0:T(1,128)}', space=vmem, size = 0x9000, scoped, tag = 'internal scratch']
  %s0 = inlined_call_operand.vmem [shape: bf16[2,16,18,5], index: 0, kind: input, shape index: {}]
  %s1 = inlined_call_operand.vmem [shape: bf16[2,16,18,5], index: 1, kind: input, shape index: {}]
  %s2 = inlined_call_operand.vmem [shape: bf16[2,16,18,5], index: 2, kind: input, shape index: {}]
  %s3 = inlined_call_operand.vmem [shape: bf16[9,5,8], index: 3, kind: input, shape index: {}]
  %s4 = inlined_call_operand.vmem [shape: f32[2,256,8], index: 4, kind: output, shape index: {0}]
  %s5 = inlined_call_operand.hbm [shape: f32[2,2,8], index: 5, kind: output, shape index: {1}]
  %6 = xla_tuple %s4, %s5
  %s7 = sld [smem:[#allocation0]]
  $region61: #{tpu_custom_call.1} parent=0
    _
  %s9 = ssub.s32 1, %s7
  %s10 = scalar_select 0, %s9, %s7
  $region1: #{tpu_custom_call.1} parent=0
    #allocation2 [shape = 'u8[2048]{0}', space=vmem, size = 0x800, scoped, tag = 'output window, operand 1']
    #allocation3 [shape = 's32[2]{0}', space=sflag, size = 0x8, scoped, tag = 'scoped memory for tpu_custom_call.1']
    %11 = vsyncpa [#allocation3], 0
    %s12 = scalar_lea.sflag [#allocation3], 1
    %13 = vsyncpa %s12, 0
    loop: start=0, step=1, limit=10
    $region2: #{tpu_custom_call.1} parent=1 // loop_pre_header
      _
    $region3: #{tpu_custom_call.1} parent=1 // loop_header
      %s15 = sphi 0, %s19
      %p16 = scmp.ge.s32.totalorder %s15, 10
      %s22 = sphi 0, %s34
      %s23 = sphi 0, %s30
      %s24 = sphi 0, %s22
      %s25 = sphi 0, %s23
      %s26 = sphi 0, %s24
      %s27 = sphi 0, %s25
      %s39 = sphi 0, %s41
      %s42 = sphi 0, %s39
      %s43 = sphi 0, %s42
      %s59 = sphi 0, %s43
      %s67 = sphi 0, %s69
      %s70 = sphi 0, %s67
      %s71 = sphi 0, %s70
      %s87 = sphi 0, %s71
      %s95 = sphi 0, %s97
      %s98 = sphi 0, %s95
      %s99 = sphi 0, %s98
      %s115 = sphi 0, %s99
      %s119 = sphi 0, %s119
      %s121 = sphi 0, %s119
      %s122 = sphi 0, %s121
      %s136 = sphi 0, %s122
      %s144 = sphi 0, %s146
      %s147 = sphi 0, %s144
      %s148 = sphi 0, %s147
      %s164 = sphi 0, %s148
      %s170 = sphi 0, %s172
      %s173 = sphi 0, %s170
      %s174 = sphi 0, %s173
      %s190 = sphi 0, %s174
    $region4: #{tpu_custom_call.1} parent=1 // loop_header_branch
      %18 = sbr.rel (%p16) target = $region8
    $region5: #{tpu_custom_call.1} parent=1 // loop_body
      %s20 = ssub.s32 %s15, 1
      %s21 = ssub.s32 %s15, 2
      %s28 = sadd.s32 1, %s23
      %p29 = scmp.ge.s32.totalorder %s28, 4
      %s30 = scalar_select %p29, 0, %s28
      %s31 = sadd.s32 1, %s22
      %s32 = scalar_select %p29, %s31, %s22
      %p33 = scmp.ge.s32.totalorder %s32, 2
      %s34 = scalar_select %p33, 0, %s32
      %s35 = ssub.s32 %s22, %s34
      %s36 = ssub.s32 %s23, %s30
      %s37 = sor.u32 %s35, %s36
      %p38 = scmp.eq.s32.totalorder %s37, 0
      %s40 = sadd.s32 %s39, 1
      %s41 = scalar_select %p38, %s39, %s40
      %p44 = pneg %p38
      %p45 = scmp.eq.s32.totalorder %s15, 7
      %p46 = por %p44, %p45
      %p47 = scmp.ne.s32.totalorder %s39, %s42
      %p48 = scmp.eq.s32.totalorder %s15, 0
      %p49 = por %p47, %p48
      %p50 = scmp.ne.s32.totalorder %s39, %s42
      %p51 = scmp.eq.s32.totalorder %s20, 7
      %p52 = por %p50, %p51
      %p53 = scmp.ne.s32.totalorder %s42, %s43
      %p54 = scmp.eq.s32.totalorder %s20, 0
      %p55 = por %p53, %p54
      %p56 = scmp.ne.s32.totalorder %s42, %s43
      %p57 = scmp.eq.s32.totalorder %s21, 7
      %p58 = por %p56, %p57
      %p60 = scmp.ne.s32.totalorder %s43, %s59
      %p61 = scmp.eq.s32.totalorder %s21, 0
      %p62 = por %p60, %p61
      %s63 = ssub.s32 %s22, %s34
      %s64 = ssub.s32 %s23, %s30
      %s65 = sor.u32 %s63, %s64
      %p66 = scmp.eq.s32.totalorder %s65, 0
      %s68 = sadd.s32 %s67, 1
      %s69 = scalar_select %p66, %s67, %s68
      %p72 = pneg %p66
      %p73 = scmp.eq.s32.totalorder %s15, 7
      %p74 = por %p72, %p73
      %p75 = scmp.ne.s32.totalorder %s67, %s70
      %p76 = scmp.eq.s32.totalorder %s15, 0
      %p77 = por %p75, %p76
      %p78 = scmp.ne.s32.totalorder %s67, %s70
      %p79 = scmp.eq.s32.totalorder %s20, 7
      %p80 = por %p78, %p79
      %p81 = scmp.ne.s32.totalorder %s70, %s71
      %p82 = scmp.eq.s32.totalorder %s20, 0
      %p83 = por %p81, %p82
      %p84 = scmp.ne.s32.totalorder %s70, %s71
      %p85 = scmp.eq.s32.totalorder %s21, 7
      %p86 = por %p84, %p85
      %p88 = scmp.ne.s32.totalorder %s71, %s87
      %p89 = scmp.eq.s32.totalorder %s21, 0
      %p90 = por %p88, %p89
      %s91 = ssub.s32 %s22, %s34
      %s92 = ssub.s32 %s23, %s30
      %s93 = sor.u32 %s91, %s92
      %p94 = scmp.eq.s32.totalorder %s93, 0
      %s96 = sadd.s32 %s95, 1
      %s97 = scalar_select %p94, %s95, %s96
      %p100 = pneg %p94
      %p101 = scmp.eq.s32.totalorder %s15, 7
      %p102 = por %p100, %p101
      %p103 = scmp.ne.s32.totalorder %s95, %s98
      %p104 = scmp.eq.s32.totalorder %s15, 0
      %p105 = por %p103, %p104
      %p106 = scmp.ne.s32.totalorder %s95, %s98
      %p107 = scmp.eq.s32.totalorder %s20, 7
      %p108 = por %p106, %p107
      %p109 = scmp.ne.s32.totalorder %s98, %s99
      %p110 = scmp.eq.s32.totalorder %s20, 0
      %p111 = por %p109, %p110
      %p112 = scmp.ne.s32.totalorder %s98, %s99
      %p113 = scmp.eq.s32.totalorder %s21, 7
      %p114 = por %p112, %p113
      %p116 = scmp.ne.s32.totalorder %s99, %s115
      %p117 = scmp.eq.s32.totalorder %s21, 0
      %p118 = por %p116, %p117
      %s120 = sadd.s32 %s119, 1
      %p123 = scmp.eq.s32.totalorder %s15, 7
      %p124 = scmp.ne.s32.totalorder %s119, %s121
      %p125 = scmp.eq.s32.totalorder %s15, 0
      %p126 = por %p124, %p125
      %p127 = scmp.ne.s32.totalorder %s119, %s121
      %p128 = scmp.eq.s32.totalorder %s20, 7
      %p129 = por %p127, %p128
      %p130 = scmp.ne.s32.totalorder %s121, %s122
      %p131 = scmp.eq.s32.totalorder %s20, 0
      %p132 = por %p130, %p131
      %p133 = scmp.ne.s32.totalorder %s121, %s122
      %p134 = scmp.eq.s32.totalorder %s21, 7
      %p135 = por %p133, %p134
      %p137 = scmp.ne.s32.totalorder %s122, %s136
      %p138 = scmp.eq.s32.totalorder %s21, 0
      %p139 = por %p137, %p138
      %s140 = ssub.s32 %s22, %s34
      %s141 = ssub.s32 %s23, %s30
      %s142 = sor.u32 %s140, %s141
      %p143 = scmp.eq.s32.totalorder %s142, 0
      %s145 = sadd.s32 %s144, 1
      %s146 = scalar_select %p143, %s144, %s145
      %p149 = pneg %p143
      %p150 = scmp.eq.s32.totalorder %s15, 7
      %p151 = por %p149, %p150
      %p152 = scmp.ne.s32.totalorder %s144, %s147
      %p153 = scmp.eq.s32.totalorder %s15, 0
      %p154 = por %p152, %p153
      %p155 = scmp.ne.s32.totalorder %s144, %s147
      %p156 = scmp.eq.s32.totalorder %s20, 7
      %p157 = por %p155, %p156
      %p158 = scmp.ne.s32.totalorder %s147, %s148
      %p159 = scmp.eq.s32.totalorder %s20, 0
      %p160 = por %p158, %p159
      %p161 = scmp.ne.s32.totalorder %s147, %s148
      %p162 = scmp.eq.s32.totalorder %s21, 7
      %p163 = por %p161, %p162
      %p165 = scmp.ne.s32.totalorder %s148, %s164
      %p166 = scmp.eq.s32.totalorder %s21, 0
      %p167 = por %p165, %p166
      %s168 = ssub.s32 %s22, %s34
      %p169 = scmp.eq.s32.totalorder %s168, 0
      %s171 = sadd.s32 %s170, 1
      %s172 = scalar_select %p169, %s170, %s171
      %p175 = pneg %p169
      %p176 = scmp.eq.s32.totalorder %s15, 7
      %p177 = por %p175, %p176
      %p178 = scmp.ne.s32.totalorder %s170, %s173
      %p179 = scmp.eq.s32.totalorder %s15, 0
      %p180 = por %p178, %p179
      %p181 = scmp.ne.s32.totalorder %s170, %s173
      %p182 = scmp.eq.s32.totalorder %s20, 7
      %p183 = por %p181, %p182
      %p184 = scmp.ne.s32.totalorder %s173, %s174
      %p185 = scmp.eq.s32.totalorder %s20, 0
      %p186 = por %p184, %p185
      %p187 = scmp.ne.s32.totalorder %s173, %s174
      %p188 = scmp.eq.s32.totalorder %s21, 7
      %p189 = por %p187, %p188
      %p191 = scmp.ne.s32.totalorder %s174, %s190
      %p192 = scmp.eq.s32.totalorder %s21, 0
      %p193 = por %p191, %p192
      %p194 = scmp.le.s32.totalorder 1, %s15
      %p195 = scmp.lt.s32.totalorder %s15, 9
      %p196 = pnand %p194, %p195
      %p197 = pneg %p196
      // Predicated region
      $region9: #{tpu_custom_call.1} parent=5 // pred_check
        _
      $region10: #{tpu_custom_call.1} parent=5 // pred_check_branch
        %199 = sbr.rel (%p196) target = $region12
      $region11: #{tpu_custom_call.1} parent=5 // pred_region
        %s200 = ssub.s32 %s15, 1
        // Predicated region
        $region13: #{tpu_custom_call.1} parent=11 // pred_check
          %p201 = pneg %p132
        $region14: #{tpu_custom_call.1} parent=11 // pred_check_branch
          %203 = sbr.rel (%p201) target = $region16
        $region15: #{tpu_custom_call.1} parent=11 // pred_region
          _
        $region16: #{tpu_custom_call.1} parent=11 // pred_fallthru
          _
      $region12: #{tpu_custom_call.1} parent=5 // pred_fallthru
        _
      %p204 = scmp.lt.s32.totalorder %s15, 8
      // Predicated region
      $region17: #{tpu_custom_call.1} parent=5 // pred_check
        %p205 = pneg %p204
      $region18: #{tpu_custom_call.1} parent=5 // pred_check_branch
        %207 = sbr.rel (%p205) target = $region20
      $region19: #{tpu_custom_call.1} parent=5 // pred_region
        // Predicated region
        $region21: #{tpu_custom_call.1} parent=19 // pred_check
          %p208 = pneg %p49
        $region22: #{tpu_custom_call.1} parent=19 // pred_check_branch
          %210 = sbr.rel (%p208) target = $region24
        $region23: #{tpu_custom_call.1} parent=19 // pred_region
          %s211 = smul.u32 4, %s23
          %p212 = scmp.lt.s32.totalorder %s22, 1
          %s213 = scalar_select %p212, %s22, 1
          %p214 = scmp.lt.s32.totalorder %s211, 15
          %s215 = scalar_select %p214, %s211, 15
          %s216 = smul.addr %s215, 3
          %s217 = smul.addr %s213, 48
          %s218 = sadd.s32 %s216, %s217
          %s219 = smul.addr %s218, 4
          %s220 = scalar_lea.vmem %s0, %s219
          %s221 = smul.u32 4, %s23
        $region24: #{tpu_custom_call.1} parent=19 // pred_fallthru
          _
        // Predicated region
        $region25: #{tpu_custom_call.1} parent=19 // pred_check
          %p222 = pneg %p77
        $region26: #{tpu_custom_call.1} parent=19 // pred_check_branch
          %224 = sbr.rel (%p222) target = $region28
        $region27: #{tpu_custom_call.1} parent=19 // pred_region
          %s225 = smul.u32 4, %s23
          %p226 = scmp.lt.s32.totalorder %s22, 1
          %s227 = scalar_select %p226, %s22, 1
          %p228 = scmp.lt.s32.totalorder %s225, 15
          %s229 = scalar_select %p228, %s225, 15
          %s230 = smul.addr %s229, 3
          %s231 = smul.addr %s227, 48
          %s232 = sadd.s32 %s230, %s231
          %s233 = smul.addr %s232, 4
          %s234 = scalar_lea.vmem %s1, %s233
          %s235 = smul.u32 4, %s23
        $region28: #{tpu_custom_call.1} parent=19 // pred_fallthru
          _
        // Predicated region
        $region29: #{tpu_custom_call.1} parent=19 // pred_check
          %p236 = pneg %p105
        $region30: #{tpu_custom_call.1} parent=19 // pred_check_branch
          %238 = sbr.rel (%p236) target = $region32
        $region31: #{tpu_custom_call.1} parent=19 // pred_region
          %s239 = smul.u32 4, %s23
          %p240 = scmp.lt.s32.totalorder %s22, 1
          %s241 = scalar_select %p240, %s22, 1
          %p242 = scmp.lt.s32.totalorder %s239, 15
          %s243 = scalar_select %p242, %s239, 15
          %s244 = smul.addr %s243, 3
          %s245 = smul.addr %s241, 48
          %s246 = sadd.s32 %s244, %s245
          %s247 = smul.addr %s246, 4
          %s248 = scalar_lea.vmem %s2, %s247
          %s249 = smul.u32 4, %s23
        $region32: #{tpu_custom_call.1} parent=19 // pred_fallthru
          _
      $region20: #{tpu_custom_call.1} parent=5 // pred_fallthru
        _
      %p250 = scmp.le.s32.totalorder 1, %s15
      %p251 = scmp.lt.s32.totalorder %s15, 9
      %p252 = pnand %p250, %p251
      %p253 = pneg %p252
      // Predicated region
      $region33: #{tpu_custom_call.1} parent=5 // pred_check
        _
      $region34: #{tpu_custom_call.1} parent=5 // pred_check_branch
        %255 = sbr.rel (%p252) target = $region36
      $region35: #{tpu_custom_call.1} parent=5 // pred_region
        %s256 = ssub.s32 %s15, 1
        %s257 = smul.u32 4, %s25
        %p258 = scmp.lt.s32.totalorder %s24, 1
        %s259 = scalar_select %p258, %s24, 1
        %p260 = scmp.lt.s32.totalorder %s257, 15
        %s261 = scalar_select %p260, %s257, 15
        %s262 = smul.addr %s261, 3
        %s263 = smul.addr %s259, 48
        %s264 = sadd.s32 %s262, %s263
        %s265 = smul.addr %s264, 4
        %s266 = scalar_lea.vmem %s0, %s265
        %p267 = pneg %p55
        %p268 = pneg %p52
        %s269 = smul.u32 4, %s25
        %p270 = scmp.lt.s32.totalorder %s24, 1
        %s271 = scalar_select %p270, %s24, 1
        %p272 = scmp.lt.s32.totalorder %s269, 15
        %s273 = scalar_select %p272, %s269, 15
        %s274 = smul.addr %s273, 3
        %s275 = smul.addr %s271, 48
        %s276 = sadd.s32 %s274, %s275
        %s277 = smul.addr %s276, 4
        %s278 = scalar_lea.vmem %s1, %s277
        %p279 = pneg %p83
        %p280 = pneg %p80
        %s281 = smul.u32 4, %s25
        %p282 = scmp.lt.s32.totalorder %s24, 1
        %s283 = scalar_select %p282, %s24, 1
        %p284 = scmp.lt.s32.totalorder %s281, 15
        %s285 = scalar_select %p284, %s281, 15
        %s286 = smul.addr %s285, 3
        %s287 = smul.addr %s283, 48
        %s288 = sadd.s32 %s286, %s287
        %s289 = smul.addr %s288, 4
        %s290 = scalar_lea.vmem %s2, %s289
        %p291 = pneg %p111
        %p292 = pneg %p108
        %p293 = pneg %p132
        %p294 = pneg %p129
        %p295 = pneg %p160
        %p296 = pneg %p157
        %s297 = smul.u32 8, %s25
        %p298 = scmp.lt.s32.totalorder %s24, 1
        %s299 = scalar_select %p298, %s24, 1
        %p300 = scmp.lt.s32.totalorder %s297, 31
        %s301 = scalar_select %p300, %s297, 31
        %s302 = smul.addr %s299, 32
        %s303 = sadd.s32 %s301, %s302
        %s304 = smul.addr %s303, 8
        %s305 = scalar_lea.vmem %s4, %s304
        %p306 = pneg %p186
        %p307 = pneg %p183
        %s308 = sand.u32 %s173, 1
        %s309 = scalar_lea.sflag [#allocation3], %s308
        %s310 = sand.u32 %s173, 1
        %s311 = smul.addr %s310, 2
        %s312 = scalar_lea.vmem [#allocation2], %s311
        %s313 = smul.u32 4, %s25
        %p314 = scmp.lt.s32.totalorder %s24, 1
        %s315 = scalar_select %p314, %s24, 1
        %p316 = scmp.lt.s32.totalorder %s313, 15
        %s317 = scalar_select %p316, %s313, 15
        %s318 = smul.addr %s317, 3
        %s319 = smul.addr %s315, 48
        %s320 = sadd.s32 %s318, %s319
        %s321 = smul.addr %s320, 4
        %s322 = scalar_lea.vmem %s0, %s321
        %s323 = smul.u32 4, %s25
        %s324 = smul.u32 4, %s25
        %p325 = scmp.lt.s32.totalorder %s24, 1
        %s326 = scalar_select %p325, %s24, 1
        %p327 = scmp.lt.s32.totalorder %s324, 15
        %s328 = scalar_select %p327, %s324, 15
        %s329 = smul.addr %s328, 3
        %s330 = smul.addr %s326, 48
        %s331 = sadd.s32 %s329, %s330
        %s332 = smul.addr %s331, 4
        %s333 = scalar_lea.vmem %s1, %s332
        %s334 = smul.u32 4, %s25
        %s335 = smul.u32 4, %s25
        %p336 = scmp.lt.s32.totalorder %s24, 1
        %s337 = scalar_select %p336, %s24, 1
        %p338 = scmp.lt.s32.totalorder %s335, 15
        %s339 = scalar_select %p338, %s335, 15
        %s340 = smul.addr %s339, 3
        %s341 = smul.addr %s337, 48
        %s342 = sadd.s32 %s340, %s341
        %s343 = smul.addr %s342, 4
        %s344 = scalar_lea.vmem %s2, %s343
        %s345 = smul.u32 4, %s25
        %s346 = smul.u32 8, %s25
        %p347 = scmp.lt.s32.totalorder %s24, 1
        %s348 = scalar_select %p347, %s24, 1
        %p349 = scmp.lt.s32.totalorder %s346, 31
        %s350 = scalar_select %p349, %s346, 31
        %s351 = smul.addr %s348, 32
        %s352 = sadd.s32 %s350, %s351
        %s353 = smul.addr %s352, 8
        %s354 = scalar_lea.vmem %s4, %s353
        %s355 = smul.u32 8, %s25
        %v357 = vld [vmem:[%s322] sm:$0xf]
        %v358 = vld [vmem:[%s322 + $0x4] sm:$0xf]
        %v359 = vld [vmem:[%s322 + $0x8] sm:$0x1]
        %v360 = vld [vmem:[%s322 + $0xc] sm:$0xf]
        %v361 = vld [vmem:[%s322 + $0x10] sm:$0xf]
        %v362 = vld [vmem:[%s322 + $0x14] sm:$0x1]
        %v363 = vld [vmem:[%s322 + $0x18] sm:$0xf]
        %v364 = vld [vmem:[%s322 + $0x1c] sm:$0xf]
        %v365 = vld [vmem:[%s322 + $0x20] sm:$0x1]
        %v366 = vld [vmem:[%s322 + $0x24] sm:$0xf]
        %v367 = vld [vmem:[%s322 + $0x28] sm:$0xf]
        %v368 = vld [vmem:[%s322 + $0x2c] sm:$0x1]
        %v369 = vld [vmem:[%s3] sm:$0x7]
        %vm370 = vsmask.f32 3328
        %vm371 = vsmask.f32 7440
        %vm372 = vmor %vm370, %vm371
        %v374 = vshrl.u32 %v357, 16
        %v376 = vrot.slane %v374, 4
        %v377 = vshll.u32 %v357, 16
        %v379 = vrot.slane %v377, 5
        %v380 = vor.u32 %v376, %v379
        %v381 = vrot.slane %v380, 4
        %v383 = vshll.u32 %v358, 16
        %v385 = vrot.slane %v383, 5
        %v386 = vsel %vm372, %v381, %v385
        %v387 = vshrl.u32 %v358, 16
        %v389 = vrot.slane %v387, 4
        %v390 = vor.u32 %v389, %v385
        %v391 = vrot.slane %v390, 4
        %v393 = vshll.u32 %v359, 16
        %v395 = vrot.slane %v393, 5
        %v396 = vsel %vm372, %v391, %v395
        %v398 = vshrl.u32 %v360, 16
        %v400 = vrot.slane %v398, 4
        %v401 = vshll.u32 %v360, 16
        %v403 = vrot.slane %v401, 5
        %v404 = vor.u32 %v400, %v403
        %v405 = vrot.slane %v404, 4
        %v407 = vshll.u32 %v361, 16
        %v409 = vrot.slane %v407, 5
        %v410 = vsel %vm372, %v405, %v409
        %v411 = vshrl.u32 %v361, 16
        %v413 = vrot.slane %v411, 4
        %v414 = vor.u32 %v413, %v409
        %v415 = vrot.slane %v414, 4
        %v417 = vshll.u32 %v362, 16
        %v419 = vrot.slane %v417, 5
        %v420 = vsel %vm372, %v415, %v419
        %v422 = vshrl.u32 %v363, 16
        %v424 = vrot.slane %v422, 4
        %v425 = vshll.u32 %v363, 16
        %v427 = vrot.slane %v425, 5
        %v428 = vor.u32 %v424, %v427
        %v429 = vrot.slane %v428, 4
        %v431 = vshll.u32 %v364, 16
        %v433 = vrot.slane %v431, 5
        %v434 = vsel %vm372, %v429, %v433
        %v435 = vshrl.u32 %v364, 16
        %v437 = vrot.slane %v435, 4
        %v438 = vor.u32 %v437, %v433
        %v439 = vrot.slane %v438, 4
        %v441 = vshll.u32 %v365, 16
        %v443 = vrot.slane %v441, 5
        %v444 = vsel %vm372, %v439, %v443
        %v446 = vshrl.u32 %v366, 16
        %v448 = vrot.slane %v446, 4
        %v449 = vshll.u32 %v366, 16
        %v451 = vrot.slane %v449, 5
        %v452 = vor.u32 %v448, %v451
        %v453 = vrot.slane %v452, 4
        %v455 = vshll.u32 %v367, 16
        %v457 = vrot.slane %v455, 5
        %v458 = vsel %vm372, %v453, %v457
        %v459 = vshrl.u32 %v367, 16
        %v461 = vrot.slane %v459, 4
        %v462 = vor.u32 %v461, %v457
        %v463 = vrot.slane %v462, 4
        %v465 = vshll.u32 %v368, 16
        %v467 = vrot.slane %v465, 5
        %v468 = vsel %vm372, %v463, %v467
        %s469 = scalar_lea.vmem %s3, 4
        %v470 = vld [vmem:[%s469] sm:$0x7]
        %v471 = vunpack.c.l.b16 %v386
        %v472 = vunpack.c.l.b16 %v396
        %v473 = vunpack.c.l.b16 %v410
        %v474 = vunpack.c.l.b16 %v420
        %v475 = vunpack.c.l.b16 %v434
        %v476 = vunpack.c.l.b16 %v444
        %v477 = vunpack.c.l.b16 %v458
        %v478 = vunpack.c.l.b16 %v468
        %v479 = vpack.c.b16 %v472, %v471
        %v480 = vpack.c.b16 %v474, %v473
        %v481 = vpack.c.b16 %v476, %v475
        %v482 = vpack.c.b16 %v478, %v477
        %vm483 = vcmask 39936
        %v485 = vsel %vm483, %v479, 0
        %v488 = vsel %vm483, %v480, 0
        %v491 = vsel %vm483, %v481, 0
        %v494 = vsel %vm483, %v482, 0
        %vm496 = vcmask 1041408
        %vm497 = vcmask 1042432
        %v498 = vsel %vm496, 4294967295, 65535
        %v499 = vsel %vm497, %v498, 0
        %v501 = vand.u32 %v470, %v499
        %503 = vmatpush.bf16.msra.mxu0 0
        %504 = vmatpush.bf16.msra.mxu0 0
        %505 = vmatpush.bf16.msra.mxu0 0
        %506 = vmatpush.bf16.msra.mxu0 0
        %507 = vmatpush.bf16.msra.mxu0 0
        %508 = vmatpush.bf16.msra.mxu0 0
        %509 = vmatpush.bf16.msra.mxu0 0
        %510 = vmatpush.bf16.msra.mxu0 %v501
        %511 = vmatmul.bf16.gmra.mxu0 %v485
        %v512 = vpop.f32.mrf.mxu0
        %v513 = vadd.f32 0.0, %v512
        %v514 = vpop.f32.mrf.mxu0
        %v515 = vadd.f32 0.0, %v514
        %516 = vmatmul.bf16.gmra.mxu0 %v488
        %v517 = vpop.f32.mrf.mxu0
        %v518 = vadd.f32 0.0, %v517
        %v519 = vpop.f32.mrf.mxu0
        %v520 = vadd.f32 0.0, %v519
        %521 = vmatmul.bf16.gmra.mxu0 %v491
        %v522 = vpop.f32.mrf.mxu0
        %v523 = vadd.f32 0.0, %v522
        %v524 = vpop.f32.mrf.mxu0
        %v525 = vadd.f32 0.0, %v524
        %526 = vmatmul.bf16.gmra.mxu0 %v494
        %v527 = vpop.f32.mrf.mxu0
        %v528 = vadd.f32 0.0, %v527
        %v529 = vpop.f32.mrf.mxu0
        %v530 = vadd.f32 0.0, %v529
        %531 = vdwg.mxu0
        %v540 = vunpack.c.l.b16 %v357
        %v541 = vunpack.c.l.b16 %v358
        %v542 = vunpack.c.l.b16 %v360
        %v543 = vunpack.c.l.b16 %v361
        %v544 = vunpack.c.l.b16 %v363
        %v545 = vunpack.c.l.b16 %v364
        %v546 = vunpack.c.l.b16 %v366
        %v547 = vunpack.c.l.b16 %v367
        %v548 = vpack.c.b16 %v541, %v540
        %v549 = vpack.c.b16 %v543, %v542
        %v550 = vpack.c.b16 %v545, %v544
        %v551 = vpack.c.b16 %v547, %v546
        %v553 = vsel %vm483, %v548, 0
        %v556 = vsel %vm483, %v549, 0
        %v559 = vsel %vm483, %v550, 0
        %v562 = vsel %vm483, %v551, 0
        %v565 = vand.u32 %v369, %v499
        %567 = vmatpush.bf16.msra.mxu0 0
        %568 = vmatpush.bf16.msra.mxu0 0
        %569 = vmatpush.bf16.msra.mxu0 0
        %570 = vmatpush.bf16.msra.mxu0 0
        %571 = vmatpush.bf16.msra.mxu0 0
        %572 = vmatpush.bf16.msra.mxu0 0
        %573 = vmatpush.bf16.msra.mxu0 0
        %574 = vmatpush.bf16.msra.mxu0 %v565
        %575 = vmatmul.bf16.gmra.mxu0 %v553
        %v576 = vpop.f32.mrf.mxu0
        %v577 = vadd.f32 %v513, %v576
        %v578 = vpop.f32.mrf.mxu0
        %v579 = vadd.f32 %v515, %v578
        %580 = vmatmul.bf16.gmra.mxu0 %v556
        %v581 = vpop.f32.mrf.mxu0
        %v582 = vadd.f32 %v518, %v581
        %v583 = vpop.f32.mrf.mxu0
        %v584 = vadd.f32 %v520, %v583
        %585 = vmatmul.bf16.gmra.mxu0 %v559
        %v586 = vpop.f32.mrf.mxu0
        %v587 = vadd.f32 %v523, %v586
        %v588 = vpop.f32.mrf.mxu0
        %v589 = vadd.f32 %v525, %v588
        %590 = vmatmul.bf16.gmra.mxu0 %v562
        %v591 = vpop.f32.mrf.mxu0
        %v592 = vadd.f32 %v528, %v591
        %v593 = vpop.f32.mrf.mxu0
        %v594 = vadd.f32 %v530, %v593
        %595 = vdwg.mxu0
        %vm600 = vcmask 1042432
        %vm601 = vcmask 1046532
        %vm602 = vmor %vm600, %vm601
        %v603 = vrot.slane %v357, 5
        %v604 = vrot.slane %v603, 4
        %v605 = vrot.slane %v358, 5
        %v606 = vsel %vm602, %v604, %v605
        %v607 = vrot.slane %v605, 4
        %v608 = vrot.slane %v359, 5
        %v609 = vsel %vm602, %v607, %v608
        %v610 = vrot.slane %v360, 5
        %v611 = vrot.slane %v610, 4
        %v612 = vrot.slane %v361, 5
        %v613 = vsel %vm602, %v611, %v612
        %v614 = vrot.slane %v612, 4
        %v615 = vrot.slane %v362, 5
        %v616 = vsel %vm602, %v614, %v615
        %v617 = vrot.slane %v363, 5
        %v618 = vrot.slane %v617, 4
        %v619 = vrot.slane %v364, 5
        %v620 = vsel %vm602, %v618, %v619
        %v621 = vrot.slane %v619, 4
        %v622 = vrot.slane %v365, 5
        %v623 = vsel %vm602, %v621, %v622
        %v624 = vrot.slane %v366, 5
        %v625 = vrot.slane %v624, 4
        %v626 = vrot.slane %v367, 5
        %v627 = vsel %vm602, %v625, %v626
        %v628 = vrot.slane %v626, 4
        %v629 = vrot.slane %v368, 5
        %v630 = vsel %vm602, %v628, %v629
        %s631 = scalar_lea.vmem %s3, 8
        %v632 = vld [vmem:[%s631] sm:$0x7]
        %v633 = vunpack.c.l.b16 %v606
        %v634 = vunpack.c.l.b16 %v609
        %v635 = vunpack.c.l.b16 %v613
        %v636 = vunpack.c.l.b16 %v616
        %v637 = vunpack.c.l.b16 %v620
        %v638 = vunpack.c.l.b16 %v623
        %v639 = vunpack.c.l.b16 %v627
        %v640 = vunpack.c.l.b16 %v630
        %v641 = vpack.c.b16 %v634, %v633
        %v642 = vpack.c.b16 %v636, %v635
        %v643 = vpack.c.b16 %v638, %v637
        %v644 = vpack.c.b16 %v640, %v639
        %v646 = vsel %vm483, %v641, 0
        %v649 = vsel %vm483, %v642, 0
        %v652 = vsel %vm483, %v643, 0
        %v655 = vsel %vm483, %v644, 0
        %v658 = vand.u32 %v632, %v499
        %660 = vmatpush.bf16.msra.mxu0 0
        %661 = vmatpush.bf16.msra.mxu0 0
        %662 = vmatpush.bf16.msra.mxu0 0
        %663 = vmatpush.bf16.msra.mxu0 0
        %664 = vmatpush.bf16.msra.mxu0 0
        %665 = vmatpush.bf16.msra.mxu0 0
        %666 = vmatpush.bf16.msra.mxu0 0
        %667 = vmatpush.bf16.msra.mxu0 %v658
        %668 = vmatmul.bf16.gmra.mxu0 %v646
        %v669 = vpop.f32.mrf.mxu0
        %v670 = vadd.f32 0.0, %v669
        %v671 = vpop.f32.mrf.mxu0
        %v672 = vadd.f32 0.0, %v671
        %673 = vmatmul.bf16.gmra.mxu0 %v649
        %v674 = vpop.f32.mrf.mxu0
        %v675 = vadd.f32 0.0, %v674
        %v676 = vpop.f32.mrf.mxu0
        %v677 = vadd.f32 0.0, %v676
        %678 = vmatmul.bf16.gmra.mxu0 %v652
        %v679 = vpop.f32.mrf.mxu0
        %v680 = vadd.f32 0.0, %v679
        %v681 = vpop.f32.mrf.mxu0
        %v682 = vadd.f32 0.0, %v681
        %683 = vmatmul.bf16.gmra.mxu0 %v655
        %v684 = vpop.f32.mrf.mxu0
        %v685 = vadd.f32 0.0, %v684
        %v686 = vpop.f32.mrf.mxu0
        %v687 = vadd.f32 0.0, %v686
        %688 = vdwg.mxu0
        %v689 = vadd.f32 %v577, %v670
        %v690 = vadd.f32 %v579, %v672
        %v691 = vadd.f32 %v582, %v675
        %v692 = vadd.f32 %v584, %v677
        %v693 = vadd.f32 %v587, %v680
        %v694 = vadd.f32 %v589, %v682
        %v695 = vadd.f32 %v592, %v685
        %v696 = vadd.f32 %v594, %v687
        %v697 = vld [vmem:[%s333] sm:$0xf]
        %v698 = vld [vmem:[%s333 + $0x4] sm:$0xf]
        %v699 = vld [vmem:[%s333 + $0x8] sm:$0x1]
        %v700 = vld [vmem:[%s333 + $0xc] sm:$0xf]
        %v701 = vld [vmem:[%s333 + $0x10] sm:$0xf]
        %v702 = vld [vmem:[%s333 + $0x14] sm:$0x1]
        %v703 = vld [vmem:[%s333 + $0x18] sm:$0xf]
        %v704 = vld [vmem:[%s333 + $0x1c] sm:$0xf]
        %v705 = vld [vmem:[%s333 + $0x20] sm:$0x1]
        %v706 = vld [vmem:[%s333 + $0x24] sm:$0xf]
        %v707 = vld [vmem:[%s333 + $0x28] sm:$0xf]
        %v708 = vld [vmem:[%s333 + $0x2c] sm:$0x1]
        %s709 = scalar_lea.vmem %s3, 12
        %v710 = vld [vmem:[%s709] sm:$0x7]
        %v719 = vunpack.c.l.b16 %v697
        %v720 = vunpack.c.l.b16 %v698
        %v721 = vunpack.c.l.b16 %v700
        %v722 = vunpack.c.l.b16 %v701
        %v723 = vunpack.c.l.b16 %v703
        %v724 = vunpack.c.l.b16 %v704
        %v725 = vunpack.c.l.b16 %v706
        %v726 = vunpack.c.l.b16 %v707
        %v727 = vpack.c.b16 %v720, %v719
        %v728 = vpack.c.b16 %v722, %v721
        %v729 = vpack.c.b16 %v724, %v723
        %v730 = vpack.c.b16 %v726, %v725
        %v732 = vsel %vm483, %v727, 0
        %v735 = vsel %vm483, %v728, 0
        %v738 = vsel %vm483, %v729, 0
        %v741 = vsel %vm483, %v730, 0
        %v744 = vand.u32 %v710, %v499
        %746 = vmatpush.bf16.msra.mxu0 0
        %747 = vmatpush.bf16.msra.mxu0 0
        %748 = vmatpush.bf16.msra.mxu0 0
        %749 = vmatpush.bf16.msra.mxu0 0
        %750 = vmatpush.bf16.msra.mxu0 0
        %751 = vmatpush.bf16.msra.mxu0 0
        %752 = vmatpush.bf16.msra.mxu0 0
        %753 = vmatpush.bf16.msra.mxu0 %v744
        %754 = vmatmul.bf16.gmra.mxu0 %v732
        %v755 = vpop.f32.mrf.mxu0
        %v756 = vadd.f32 0.0, %v755
        %v757 = vpop.f32.mrf.mxu0
        %v758 = vadd.f32 0.0, %v757
        %759 = vmatmul.bf16.gmra.mxu0 %v735
        %v760 = vpop.f32.mrf.mxu0
        %v761 = vadd.f32 0.0, %v760
        %v762 = vpop.f32.mrf.mxu0
        %v763 = vadd.f32 0.0, %v762
        %764 = vmatmul.bf16.gmra.mxu0 %v738
        %v765 = vpop.f32.mrf.mxu0
        %v766 = vadd.f32 0.0, %v765
        %v767 = vpop.f32.mrf.mxu0
        %v768 = vadd.f32 0.0, %v767
        %769 = vmatmul.bf16.gmra.mxu0 %v741
        %v770 = vpop.f32.mrf.mxu0
        %v771 = vadd.f32 0.0, %v770
        %v772 = vpop.f32.mrf.mxu0
        %v773 = vadd.f32 0.0, %v772
        %774 = vdwg.mxu0
        %v775 = vadd.f32 %v689, %v756
        %v776 = vadd.f32 %v690, %v758
        %v777 = vadd.f32 %v691, %v761
        %v778 = vadd.f32 %v692, %v763
        %v779 = vadd.f32 %v693, %v766
        %v780 = vadd.f32 %v694, %v768
        %v781 = vadd.f32 %v695, %v771
        %v782 = vadd.f32 %v696, %v773
        %v784 = vshrl.u32 %v697, 16
        %v786 = vrot.slane %v784, 4
        %v787 = vshll.u32 %v697, 16
        %v789 = vrot.slane %v787, 5
        %v790 = vor.u32 %v786, %v789
        %v791 = vrot.slane %v790, 4
        %v793 = vshll.u32 %v698, 16
        %v795 = vrot.slane %v793, 5
        %v796 = vsel %vm372, %v791, %v795
        %v797 = vshrl.u32 %v698, 16
        %v799 = vrot.slane %v797, 4
        %v800 = vor.u32 %v799, %v795
        %v801 = vrot.slane %v800, 4
        %v803 = vshll.u32 %v699, 16
        %v805 = vrot.slane %v803, 5
        %v806 = vsel %vm372, %v801, %v805
        %v808 = vshrl.u32 %v700, 16
        %v810 = vrot.slane %v808, 4
        %v811 = vshll.u32 %v700, 16
        %v813 = vrot.slane %v811, 5
        %v814 = vor.u32 %v810, %v813
        %v815 = vrot.slane %v814, 4
        %v817 = vshll.u32 %v701, 16
        %v819 = vrot.slane %v817, 5
        %v820 = vsel %vm372, %v815, %v819
        %v821 = vshrl.u32 %v701, 16
        %v823 = vrot.slane %v821, 4
        %v824 = vor.u32 %v823, %v819
        %v825 = vrot.slane %v824, 4
        %v827 = vshll.u32 %v702, 16
        %v829 = vrot.slane %v827, 5
        %v830 = vsel %vm372, %v825, %v829
        %v832 = vshrl.u32 %v703, 16
        %v834 = vrot.slane %v832, 4
        %v835 = vshll.u32 %v703, 16
        %v837 = vrot.slane %v835, 5
        %v838 = vor.u32 %v834, %v837
        %v839 = vrot.slane %v838, 4
        %v841 = vshll.u32 %v704, 16
        %v843 = vrot.slane %v841, 5
        %v844 = vsel %vm372, %v839, %v843
        %v845 = vshrl.u32 %v704, 16
        %v847 = vrot.slane %v845, 4
        %v848 = vor.u32 %v847, %v843
        %v849 = vrot.slane %v848, 4
        %v851 = vshll.u32 %v705, 16
        %v853 = vrot.slane %v851, 5
        %v854 = vsel %vm372, %v849, %v853
        %v856 = vshrl.u32 %v706, 16
        %v858 = vrot.slane %v856, 4
        %v859 = vshll.u32 %v706, 16
        %v861 = vrot.slane %v859, 5
        %v862 = vor.u32 %v858, %v861
        %v863 = vrot.slane %v862, 4
        %v865 = vshll.u32 %v707, 16
        %v867 = vrot.slane %v865, 5
        %v868 = vsel %vm372, %v863, %v867
        %v869 = vshrl.u32 %v707, 16
        %v871 = vrot.slane %v869, 4
        %v872 = vor.u32 %v871, %v867
        %v873 = vrot.slane %v872, 4
        %v875 = vshll.u32 %v708, 16
        %v877 = vrot.slane %v875, 5
        %v878 = vsel %vm372, %v873, %v877
        %s879 = scalar_lea.vmem %s3, 16
        %v880 = vld [vmem:[%s879] sm:$0x7]
        %v881 = vunpack.c.l.b16 %v796
        %v882 = vunpack.c.l.b16 %v806
        %v883 = vunpack.c.l.b16 %v820
        %v884 = vunpack.c.l.b16 %v830
        %v885 = vunpack.c.l.b16 %v844
        %v886 = vunpack.c.l.b16 %v854
        %v887 = vunpack.c.l.b16 %v868
        %v888 = vunpack.c.l.b16 %v878
        %v889 = vpack.c.b16 %v882, %v881
        %v890 = vpack.c.b16 %v884, %v883
        %v891 = vpack.c.b16 %v886, %v885
        %v892 = vpack.c.b16 %v888, %v887
        %v894 = vsel %vm483, %v889, 0
        %v897 = vsel %vm483, %v890, 0
        %v900 = vsel %vm483, %v891, 0
        %v903 = vsel %vm483, %v892, 0
        %v906 = vand.u32 %v880, %v499
        %908 = vmatpush.bf16.msra.mxu0 0
        %909 = vmatpush.bf16.msra.mxu0 0
        %910 = vmatpush.bf16.msra.mxu0 0
        %911 = vmatpush.bf16.msra.mxu0 0
        %912 = vmatpush.bf16.msra.mxu0 0
        %913 = vmatpush.bf16.msra.mxu0 0
        %914 = vmatpush.bf16.msra.mxu0 0
        %915 = vmatpush.bf16.msra.mxu0 %v906
        %916 = vmatmul.bf16.gmra.mxu0 %v894
        %v917 = vpop.f32.mrf.mxu0
        %v918 = vadd.f32 0.0, %v917
        %v919 = vpop.f32.mrf.mxu0
        %v920 = vadd.f32 0.0, %v919
        %921 = vmatmul.bf16.gmra.mxu0 %v897
        %v922 = vpop.f32.mrf.mxu0
        %v923 = vadd.f32 0.0, %v922
        %v924 = vpop.f32.mrf.mxu0
        %v925 = vadd.f32 0.0, %v924
        %926 = vmatmul.bf16.gmra.mxu0 %v900
        %v927 = vpop.f32.mrf.mxu0
        %v928 = vadd.f32 0.0, %v927
        %v929 = vpop.f32.mrf.mxu0
        %v930 = vadd.f32 0.0, %v929
        %931 = vmatmul.bf16.gmra.mxu0 %v903
        %v932 = vpop.f32.mrf.mxu0
        %v933 = vadd.f32 0.0, %v932
        %v934 = vpop.f32.mrf.mxu0
        %v935 = vadd.f32 0.0, %v934
        %936 = vdwg.mxu0
        %v937 = vadd.f32 %v775, %v918
        %v938 = vadd.f32 %v776, %v920
        %v939 = vadd.f32 %v777, %v923
        %v940 = vadd.f32 %v778, %v925
        %v941 = vadd.f32 %v779, %v928
        %v942 = vadd.f32 %v780, %v930
        %v943 = vadd.f32 %v781, %v933
        %v944 = vadd.f32 %v782, %v935
        %v949 = vrot.slane %v697, 5
        %v950 = vrot.slane %v949, 4
        %v951 = vrot.slane %v698, 5
        %v952 = vsel %vm602, %v950, %v951
        %v953 = vrot.slane %v951, 4
        %v954 = vrot.slane %v699, 5
        %v955 = vsel %vm602, %v953, %v954
        %v956 = vrot.slane %v700, 5
        %v957 = vrot.slane %v956, 4
        %v958 = vrot.slane %v701, 5
        %v959 = vsel %vm602, %v957, %v958
        %v960 = vrot.slane %v958, 4
        %v961 = vrot.slane %v702, 5
        %v962 = vsel %vm602, %v960, %v961
        %v963 = vrot.slane %v703, 5
        %v964 = vrot.slane %v963, 4
        %v965 = vrot.slane %v704, 5
        %v966 = vsel %vm602, %v964, %v965
        %v967 = vrot.slane %v965, 4
        %v968 = vrot.slane %v705, 5
        %v969 = vsel %vm602, %v967, %v968
        %v970 = vrot.slane %v706, 5
        %v971 = vrot.slane %v970, 4
        %v972 = vrot.slane %v707, 5
        %v973 = vsel %vm602, %v971, %v972
        %v974 = vrot.slane %v972, 4
        %v975 = vrot.slane %v708, 5
        %v976 = vsel %vm602, %v974, %v975
        %s977 = scalar_lea.vmem %s3, 20
        %v978 = vld [vmem:[%s977] sm:$0x7]
        %v979 = vunpack.c.l.b16 %v952
        %v980 = vunpack.c.l.b16 %v955
        %v981 = vunpack.c.l.b16 %v959
        %v982 = vunpack.c.l.b16 %v962
        %v983 = vunpack.c.l.b16 %v966
        %v984 = vunpack.c.l.b16 %v969
        %v985 = vunpack.c.l.b16 %v973
        %v986 = vunpack.c.l.b16 %v976
        %v987 = vpack.c.b16 %v980, %v979
        %v988 = vpack.c.b16 %v982, %v981
        %v989 = vpack.c.b16 %v984, %v983
        %v990 = vpack.c.b16 %v986, %v985
        %v992 = vsel %vm483, %v987, 0
        %v995 = vsel %vm483, %v988, 0
        %v998 = vsel %vm483, %v989, 0
        %v1001 = vsel %vm483, %v990, 0
        %v1004 = vand.u32 %v978, %v499
        %1006 = vmatpush.bf16.msra.mxu0 0
        %1007 = vmatpush.bf16.msra.mxu0 0
        %1008 = vmatpush.bf16.msra.mxu0 0
        %1009 = vmatpush.bf16.msra.mxu0 0
        %1010 = vmatpush.bf16.msra.mxu0 0
        %1011 = vmatpush.bf16.msra.mxu0 0
        %1012 = vmatpush.bf16.msra.mxu0 0
        %1013 = vmatpush.bf16.msra.mxu0 %v1004
        %1014 = vmatmul.bf16.gmra.mxu0 %v992
        %v1015 = vpop.f32.mrf.mxu0
        %v1016 = vadd.f32 0.0, %v1015
        %v1017 = vpop.f32.mrf.mxu0
        %v1018 = vadd.f32 0.0, %v1017
        %1019 = vmatmul.bf16.gmra.mxu0 %v995
        %v1020 = vpop.f32.mrf.mxu0
        %v1021 = vadd.f32 0.0, %v1020
        %v1022 = vpop.f32.mrf.mxu0
        %v1023 = vadd.f32 0.0, %v1022
        %1024 = vmatmul.bf16.gmra.mxu0 %v998
        %v1025 = vpop.f32.mrf.mxu0
        %v1026 = vadd.f32 0.0, %v1025
        %v1027 = vpop.f32.mrf.mxu0
        %v1028 = vadd.f32 0.0, %v1027
        %1029 = vmatmul.bf16.gmra.mxu0 %v1001
        %v1030 = vpop.f32.mrf.mxu0
        %v1031 = vadd.f32 0.0, %v1030
        %v1032 = vpop.f32.mrf.mxu0
        %v1033 = vadd.f32 0.0, %v1032
        %1034 = vdwg.mxu0
        %v1035 = vadd.f32 %v937, %v1016
        %v1036 = vadd.f32 %v938, %v1018
        %v1037 = vadd.f32 %v939, %v1021
        %v1038 = vadd.f32 %v940, %v1023
        %v1039 = vadd.f32 %v941, %v1026
        %v1040 = vadd.f32 %v942, %v1028
        %v1041 = vadd.f32 %v943, %v1031
        %v1042 = vadd.f32 %v944, %v1033
        %v1043 = vld [vmem:[%s344] sm:$0xf]
        %v1044 = vld [vmem:[%s344 + $0x4] sm:$0xf]
        %v1045 = vld [vmem:[%s344 + $0x8] sm:$0x1]
        %v1046 = vld [vmem:[%s344 + $0xc] sm:$0xf]
        %v1047 = vld [vmem:[%s344 + $0x10] sm:$0xf]
        %v1048 = vld [vmem:[%s344 + $0x14] sm:$0x1]
        %v1049 = vld [vmem:[%s344 + $0x18] sm:$0xf]
        %v1050 = vld [vmem:[%s344 + $0x1c] sm:$0xf]
        %v1051 = vld [vmem:[%s344 + $0x20] sm:$0x1]
        %v1052 = vld [vmem:[%s344 + $0x24] sm:$0xf]
        %v1053 = vld [vmem:[%s344 + $0x28] sm:$0xf]
        %v1054 = vld [vmem:[%s344 + $0x2c] sm:$0x1]
        %s1055 = scalar_lea.vmem %s3, 24
        %v1056 = vld [vmem:[%s1055] sm:$0x7]
        %v1065 = vunpack.c.l.b16 %v1043
        %v1066 = vunpack.c.l.b16 %v1044
        %v1067 = vunpack.c.l.b16 %v1046
        %v1068 = vunpack.c.l.b16 %v1047
        %v1069 = vunpack.c.l.b16 %v1049
        %v1070 = vunpack.c.l.b16 %v1050
        %v1071 = vunpack.c.l.b16 %v1052
        %v1072 = vunpack.c.l.b16 %v1053
        %v1073 = vpack.c.b16 %v1066, %v1065
        %v1074 = vpack.c.b16 %v1068, %v1067
        %v1075 = vpack.c.b16 %v1070, %v1069
        %v1076 = vpack.c.b16 %v1072, %v1071
        %v1078 = vsel %vm483, %v1073, 0
        %v1081 = vsel %vm483, %v1074, 0
        %v1084 = vsel %vm483, %v1075, 0
        %v1087 = vsel %vm483, %v1076, 0
        %v1090 = vand.u32 %v1056, %v499
        %1092 = vmatpush.bf16.msra.mxu0 0
        %1093 = vmatpush.bf16.msra.mxu0 0
        %1094 = vmatpush.bf16.msra.mxu0 0
        %1095 = vmatpush.bf16.msra.mxu0 0
        %1096 = vmatpush.bf16.msra.mxu0 0
        %1097 = vmatpush.bf16.msra.mxu0 0
        %1098 = vmatpush.bf16.msra.mxu0 0
        %1099 = vmatpush.bf16.msra.mxu0 %v1090
        %1100 = vmatmul.bf16.gmra.mxu0 %v1078
        %v1101 = vpop.f32.mrf.mxu0
        %v1102 = vadd.f32 0.0, %v1101
        %v1103 = vpop.f32.mrf.mxu0
        %v1104 = vadd.f32 0.0, %v1103
        %1105 = vmatmul.bf16.gmra.mxu0 %v1081
        %v1106 = vpop.f32.mrf.mxu0
        %v1107 = vadd.f32 0.0, %v1106
        %v1108 = vpop.f32.mrf.mxu0
        %v1109 = vadd.f32 0.0, %v1108
        %1110 = vmatmul.bf16.gmra.mxu0 %v1084
        %v1111 = vpop.f32.mrf.mxu0
        %v1112 = vadd.f32 0.0, %v1111
        %v1113 = vpop.f32.mrf.mxu0
        %v1114 = vadd.f32 0.0, %v1113
        %1115 = vmatmul.bf16.gmra.mxu0 %v1087
        %v1116 = vpop.f32.mrf.mxu0
        %v1117 = vadd.f32 0.0, %v1116
        %v1118 = vpop.f32.mrf.mxu0
        %v1119 = vadd.f32 0.0, %v1118
        %1120 = vdwg.mxu0
        %v1121 = vadd.f32 %v1035, %v1102
        %v1122 = vadd.f32 %v1036, %v1104
        %v1123 = vadd.f32 %v1037, %v1107
        %v1124 = vadd.f32 %v1038, %v1109
        %v1125 = vadd.f32 %v1039, %v1112
        %v1126 = vadd.f32 %v1040, %v1114
        %v1127 = vadd.f32 %v1041, %v1117
        %v1128 = vadd.f32 %v1042, %v1119
        %v1130 = vshrl.u32 %v1043, 16
        %v1132 = vrot.slane %v1130, 4
        %v1133 = vshll.u32 %v1043, 16
        %v1135 = vrot.slane %v1133, 5
        %v1136 = vor.u32 %v1132, %v1135
        %v1137 = vrot.slane %v1136, 4
        %v1139 = vshll.u32 %v1044, 16
        %v1141 = vrot.slane %v1139, 5
        %v1142 = vsel %vm372, %v1137, %v1141
        %v1143 = vshrl.u32 %v1044, 16
        %v1145 = vrot.slane %v1143, 4
        %v1146 = vor.u32 %v1145, %v1141
        %v1147 = vrot.slane %v1146, 4
        %v1149 = vshll.u32 %v1045, 16
        %v1151 = vrot.slane %v1149, 5
        %v1152 = vsel %vm372, %v1147, %v1151
        %v1154 = vshrl.u32 %v1046, 16
        %v1156 = vrot.slane %v1154, 4
        %v1157 = vshll.u32 %v1046, 16
        %v1159 = vrot.slane %v1157, 5
        %v1160 = vor.u32 %v1156, %v1159
        %v1161 = vrot.slane %v1160, 4
        %v1163 = vshll.u32 %v1047, 16
        %v1165 = vrot.slane %v1163, 5
        %v1166 = vsel %vm372, %v1161, %v1165
        %v1167 = vshrl.u32 %v1047, 16
        %v1169 = vrot.slane %v1167, 4
        %v1170 = vor.u32 %v1169, %v1165
        %v1171 = vrot.slane %v1170, 4
        %v1173 = vshll.u32 %v1048, 16
        %v1175 = vrot.slane %v1173, 5
        %v1176 = vsel %vm372, %v1171, %v1175
        %v1178 = vshrl.u32 %v1049, 16
        %v1180 = vrot.slane %v1178, 4
        %v1181 = vshll.u32 %v1049, 16
        %v1183 = vrot.slane %v1181, 5
        %v1184 = vor.u32 %v1180, %v1183
        %v1185 = vrot.slane %v1184, 4
        %v1187 = vshll.u32 %v1050, 16
        %v1189 = vrot.slane %v1187, 5
        %v1190 = vsel %vm372, %v1185, %v1189
        %v1191 = vshrl.u32 %v1050, 16
        %v1193 = vrot.slane %v1191, 4
        %v1194 = vor.u32 %v1193, %v1189
        %v1195 = vrot.slane %v1194, 4
        %v1197 = vshll.u32 %v1051, 16
        %v1199 = vrot.slane %v1197, 5
        %v1200 = vsel %vm372, %v1195, %v1199
        %v1202 = vshrl.u32 %v1052, 16
        %v1204 = vrot.slane %v1202, 4
        %v1205 = vshll.u32 %v1052, 16
        %v1207 = vrot.slane %v1205, 5
        %v1208 = vor.u32 %v1204, %v1207
        %v1209 = vrot.slane %v1208, 4
        %v1211 = vshll.u32 %v1053, 16
        %v1213 = vrot.slane %v1211, 5
        %v1214 = vsel %vm372, %v1209, %v1213
        %v1215 = vshrl.u32 %v1053, 16
        %v1217 = vrot.slane %v1215, 4
        %v1218 = vor.u32 %v1217, %v1213
        %v1219 = vrot.slane %v1218, 4
        %v1221 = vshll.u32 %v1054, 16
        %v1223 = vrot.slane %v1221, 5
        %v1224 = vsel %vm372, %v1219, %v1223
        %s1225 = scalar_lea.vmem %s3, 28
        %v1226 = vld [vmem:[%s1225] sm:$0x7]
        %v1227 = vunpack.c.l.b16 %v1142
        %v1228 = vunpack.c.l.b16 %v1152
        %v1229 = vunpack.c.l.b16 %v1166
        %v1230 = vunpack.c.l.b16 %v1176
        %v1231 = vunpack.c.l.b16 %v1190
        %v1232 = vunpack.c.l.b16 %v1200
        %v1233 = vunpack.c.l.b16 %v1214
        %v1234 = vunpack.c.l.b16 %v1224
        %v1235 = vpack.c.b16 %v1228, %v1227
        %v1236 = vpack.c.b16 %v1230, %v1229
        %v1237 = vpack.c.b16 %v1232, %v1231
        %v1238 = vpack.c.b16 %v1234, %v1233
        %v1240 = vsel %vm483, %v1235, 0
        %v1243 = vsel %vm483, %v1236, 0
        %v1246 = vsel %vm483, %v1237, 0
        %v1249 = vsel %vm483, %v1238, 0
        %v1252 = vand.u32 %v1226, %v499
        %1254 = vmatpush.bf16.msra.mxu0 0
        %1255 = vmatpush.bf16.msra.mxu0 0
        %1256 = vmatpush.bf16.msra.mxu0 0
        %1257 = vmatpush.bf16.msra.mxu0 0
        %1258 = vmatpush.bf16.msra.mxu0 0
        %1259 = vmatpush.bf16.msra.mxu0 0
        %1260 = vmatpush.bf16.msra.mxu0 0
        %1261 = vmatpush.bf16.msra.mxu0 %v1252
        %1262 = vmatmul.bf16.gmra.mxu0 %v1240
        %v1263 = vpop.f32.mrf.mxu0
        %v1264 = vadd.f32 0.0, %v1263
        %v1265 = vpop.f32.mrf.mxu0
        %v1266 = vadd.f32 0.0, %v1265
        %1267 = vmatmul.bf16.gmra.mxu0 %v1243
        %v1268 = vpop.f32.mrf.mxu0
        %v1269 = vadd.f32 0.0, %v1268
        %v1270 = vpop.f32.mrf.mxu0
        %v1271 = vadd.f32 0.0, %v1270
        %1272 = vmatmul.bf16.gmra.mxu0 %v1246
        %v1273 = vpop.f32.mrf.mxu0
        %v1274 = vadd.f32 0.0, %v1273
        %v1275 = vpop.f32.mrf.mxu0
        %v1276 = vadd.f32 0.0, %v1275
        %1277 = vmatmul.bf16.gmra.mxu0 %v1249
        %v1278 = vpop.f32.mrf.mxu0
        %v1279 = vadd.f32 0.0, %v1278
        %v1280 = vpop.f32.mrf.mxu0
        %v1281 = vadd.f32 0.0, %v1280
        %1282 = vdwg.mxu0
        %v1283 = vadd.f32 %v1121, %v1264
        %v1284 = vadd.f32 %v1122, %v1266
        %v1285 = vadd.f32 %v1123, %v1269
        %v1286 = vadd.f32 %v1124, %v1271
        %v1287 = vadd.f32 %v1125, %v1274
        %v1288 = vadd.f32 %v1126, %v1276
        %v1289 = vadd.f32 %v1127, %v1279
        %v1290 = vadd.f32 %v1128, %v1281
        %v1295 = vrot.slane %v1043, 5
        %v1296 = vrot.slane %v1295, 4
        %v1297 = vrot.slane %v1044, 5
        %v1298 = vsel %vm602, %v1296, %v1297
        %v1299 = vrot.slane %v1297, 4
        %v1300 = vrot.slane %v1045, 5
        %v1301 = vsel %vm602, %v1299, %v1300
        %v1302 = vrot.slane %v1046, 5
        %v1303 = vrot.slane %v1302, 4
        %v1304 = vrot.slane %v1047, 5
        %v1305 = vsel %vm602, %v1303, %v1304
        %v1306 = vrot.slane %v1304, 4
        %v1307 = vrot.slane %v1048, 5
        %v1308 = vsel %vm602, %v1306, %v1307
        %v1309 = vrot.slane %v1049, 5
        %v1310 = vrot.slane %v1309, 4
        %v1311 = vrot.slane %v1050, 5
        %v1312 = vsel %vm602, %v1310, %v1311
        %v1313 = vrot.slane %v1311, 4
        %v1314 = vrot.slane %v1051, 5
        %v1315 = vsel %vm602, %v1313, %v1314
        %v1316 = vrot.slane %v1052, 5
        %v1317 = vrot.slane %v1316, 4
        %v1318 = vrot.slane %v1053, 5
        %v1319 = vsel %vm602, %v1317, %v1318
        %v1320 = vrot.slane %v1318, 4
        %v1321 = vrot.slane %v1054, 5
        %v1322 = vsel %vm602, %v1320, %v1321
        %s1323 = scalar_lea.vmem %s3, 32
        %v1324 = vld [vmem:[%s1323] sm:$0x7]
        %v1325 = vunpack.c.l.b16 %v1298
        %v1326 = vunpack.c.l.b16 %v1301
        %v1327 = vunpack.c.l.b16 %v1305
        %v1328 = vunpack.c.l.b16 %v1308
        %v1329 = vunpack.c.l.b16 %v1312
        %v1330 = vunpack.c.l.b16 %v1315
        %v1331 = vunpack.c.l.b16 %v1319
        %v1332 = vunpack.c.l.b16 %v1322
        %v1333 = vpack.c.b16 %v1326, %v1325
        %v1334 = vpack.c.b16 %v1328, %v1327
        %v1335 = vpack.c.b16 %v1330, %v1329
        %v1336 = vpack.c.b16 %v1332, %v1331
        %v1338 = vsel %vm483, %v1333, 0
        %v1341 = vsel %vm483, %v1334, 0
        %v1344 = vsel %vm483, %v1335, 0
        %v1347 = vsel %vm483, %v1336, 0
        %v1350 = vand.u32 %v1324, %v499
        %1352 = vmatpush.bf16.msra.mxu0 0
        %1353 = vmatpush.bf16.msra.mxu0 0
        %1354 = vmatpush.bf16.msra.mxu0 0
        %1355 = vmatpush.bf16.msra.mxu0 0
        %1356 = vmatpush.bf16.msra.mxu0 0
        %1357 = vmatpush.bf16.msra.mxu0 0
        %1358 = vmatpush.bf16.msra.mxu0 0
        %1359 = vmatpush.bf16.msra.mxu0 %v1350
        %1360 = vmatmul.bf16.gmra.mxu0 %v1338
        %v1361 = vpop.f32.mrf.mxu0
        %v1362 = vadd.f32 0.0, %v1361
        %v1363 = vpop.f32.mrf.mxu0
        %v1364 = vadd.f32 0.0, %v1363
        %1365 = vmatmul.bf16.gmra.mxu0 %v1341
        %v1366 = vpop.f32.mrf.mxu0
        %v1367 = vadd.f32 0.0, %v1366
        %v1368 = vpop.f32.mrf.mxu0
        %v1369 = vadd.f32 0.0, %v1368
        %1370 = vmatmul.bf16.gmra.mxu0 %v1344
        %v1371 = vpop.f32.mrf.mxu0
        %v1372 = vadd.f32 0.0, %v1371
        %v1373 = vpop.f32.mrf.mxu0
        %v1374 = vadd.f32 0.0, %v1373
        %1375 = vmatmul.bf16.gmra.mxu0 %v1347
        %v1376 = vpop.f32.mrf.mxu0
        %v1377 = vadd.f32 0.0, %v1376
        %v1378 = vpop.f32.mrf.mxu0
        %v1379 = vadd.f32 0.0, %v1378
        %1380 = vdwg.mxu0
        %v1381 = vadd.f32 %v1283, %v1362
        %v1382 = vadd.f32 %v1284, %v1364
        %v1383 = vadd.f32 %v1285, %v1367
        %v1384 = vadd.f32 %v1286, %v1369
        %v1385 = vadd.f32 %v1287, %v1372
        %v1386 = vadd.f32 %v1288, %v1374
        %v1387 = vadd.f32 %v1289, %v1377
        %v1388 = vadd.f32 %v1290, %v1379
        %vm1389 = vcmask 64512
        %1390 = vst.msk [vmem:[%s354] sm:$0xff] %vm1389, %v1381
        %1391 = vst.msk [vmem:[%s354 + $0x8] sm:$0xff] %vm1389, %v1382
        %1392 = vst.msk [vmem:[%s354 + $0x10] sm:$0xff] %vm1389, %v1383
        %1393 = vst.msk [vmem:[%s354 + $0x18] sm:$0xff] %vm1389, %v1384
        %1394 = vst.msk [vmem:[%s354 + $0x20] sm:$0xff] %vm1389, %v1385
        %1395 = vst.msk [vmem:[%s354 + $0x28] sm:$0xff] %vm1389, %v1386
        %1396 = vst.msk [vmem:[%s354 + $0x30] sm:$0xff] %vm1389, %v1387
        %1397 = vst.msk [vmem:[%s354 + $0x38] sm:$0xff] %vm1389, %v1388
        %v1398 = vsel %vm1389, %v1381, 0.0
        %v1399 = vsel %vm1389, %v1382, 0.0
        %v1400 = vadd.f32 %v1398, %v1399
        %v1401 = vsel %vm1389, %v1383, 0.0
        %v1402 = vadd.f32 %v1400, %v1401
        %v1403 = vsel %vm1389, %v1384, 0.0
        %v1404 = vadd.f32 %v1402, %v1403
        %v1405 = vsel %vm1389, %v1385, 0.0
        %v1406 = vadd.f32 %v1404, %v1405
        %v1407 = vsel %vm1389, %v1386, 0.0
        %v1408 = vadd.f32 %v1406, %v1407
        %v1409 = vsel %vm1389, %v1387, 0.0
        %v1410 = vadd.f32 %v1408, %v1409
        %v1411 = vsel %vm1389, %v1388, 0.0
        %v1412 = vadd.f32 %v1410, %v1411
        %v1413 = vrot.slane %v1412, 4
        %v1414 = vadd.f32 %v1412, %v1413
        %v1415 = vrot.slane %v1414, 2
        %v1416 = vadd.f32 %v1414, %v1415
        %v1417 = vrot.slane %v1416, 1
        %v1418 = vadd.f32 %v1416, %v1417
        %v1419 = vmul.f32 %v1381, %v1381
        %v1420 = vmul.f32 %v1382, %v1382
        %v1421 = vmul.f32 %v1383, %v1383
        %v1422 = vmul.f32 %v1384, %v1384
        %v1423 = vmul.f32 %v1385, %v1385
        %v1424 = vmul.f32 %v1386, %v1386
        %v1425 = vmul.f32 %v1387, %v1387
        %v1426 = vmul.f32 %v1388, %v1388
        %v1427 = vsel %vm1389, %v1419, 0.0
        %v1428 = vsel %vm1389, %v1420, 0.0
        %v1429 = vadd.f32 %v1427, %v1428
        %v1430 = vsel %vm1389, %v1421, 0.0
        %v1431 = vadd.f32 %v1429, %v1430
        %v1432 = vsel %vm1389, %v1422, 0.0
        %v1433 = vadd.f32 %v1431, %v1432
        %v1434 = vsel %vm1389, %v1423, 0.0
        %v1435 = vadd.f32 %v1433, %v1434
        %v1436 = vsel %vm1389, %v1424, 0.0
        %v1437 = vadd.f32 %v1435, %v1436
        %v1438 = vsel %vm1389, %v1425, 0.0
        %v1439 = vadd.f32 %v1437, %v1438
        %v1440 = vsel %vm1389, %v1426, 0.0
        %v1441 = vadd.f32 %v1439, %v1440
        %v1442 = vrot.slane %v1441, 4
        %v1443 = vadd.f32 %v1441, %v1442
        %v1444 = vrot.slane %v1443, 2
        %v1445 = vadd.f32 %v1443, %v1444
        %v1446 = vrot.slane %v1445, 1
        %v1447 = vadd.f32 %v1445, %v1446
        %vm1448 = vcmask 1040384
        %v1449 = vsel %vm1448, %v1418, %v1447
        %p1450 = scmp.eq.s32.totalorder %s25, 0
        // Predicated region
        $region37: #{tpu_custom_call.1} parent=35 // pred_check
          %p1451 = pneg %p1450
        $region38: #{tpu_custom_call.1} parent=35 // pred_check_branch
          %1453 = sbr.rel (%p1451) target = $region40
        $region39: #{tpu_custom_call.1} parent=35 // pred_region
          %vm1454 = vcmask 58368
          %1455 = vst.msk [vmem:[%s312] sm:$0x3] %vm1454, 0.0
        $region40: #{tpu_custom_call.1} parent=35 // pred_fallthru
          _
        %v1456 = vld [vmem:[%s312] sm:$0x3]
        %v1457 = vadd.f32 %v1456, %v1449
        %vm1458 = vcmask 58368
        %1459 = vst.msk [vmem:[%s312] sm:$0x3] %vm1458, %v1457
        %s1460 = smul.u32 8, %s25
        %p1461 = scmp.lt.s32.totalorder %s24, 1
        %s1462 = scalar_select %p1461, %s24, 1
        %p1463 = scmp.lt.s32.totalorder %s1460, 31
        %s1464 = scalar_select %p1463, %s1460, 31
        %s1465 = smul.addr %s1462, 32
        %s1466 = sadd.s32 %s1464, %s1465
        %s1467 = smul.addr %s1466, 8
        %s1468 = scalar_lea.vmem %s4, %s1467
        %s1469 = sand.u32 %s173, 1
        %s1470 = scalar_lea.sflag [#allocation3], %s1469
        %s1471 = sand.u32 %s173, 1
        %s1472 = smul.addr %s1471, 2
        %s1473 = scalar_lea.vmem [#allocation2], %s1472
        // Predicated region
        $region41: #{tpu_custom_call.1} parent=35 // pred_check
          %p1474 = pneg %p157
        $region42: #{tpu_custom_call.1} parent=35 // pred_check_branch
          %1476 = sbr.rel (%p1474) target = $region44
        $region43: #{tpu_custom_call.1} parent=35 // pred_region
          %s1477 = smul.u32 8, %s25
        $region44: #{tpu_custom_call.1} parent=35 // pred_fallthru
          _
        // Predicated region
        $region45: #{tpu_custom_call.1} parent=35 // pred_check
          %p1478 = pneg %p183
        $region46: #{tpu_custom_call.1} parent=35 // pred_check_branch
          %1480 = sbr.rel (%p1478) target = $region48
        $region47: #{tpu_custom_call.1} parent=35 // pred_region
          %1482 = vsyncadd %s1470, 0
          %s1483 = smul.addr %s24, 2
          %s1484 = scalar_lea.hbm %s5, %s1483
          %s1486 = sshll.u32 %s1473, 4
          %s1487 = int_to_ptr.vmem [resolvable:$true] %s1486
          %s1488 = sshll.u32 %s1484, 4
          %s1489 = int_to_ptr.hbm [resolvable:$true] %s1488
          %1491 = dma.vmem_to_hbm [thread:$0]  %s1487, 32, %s1489, %s1470
        $region48: #{tpu_custom_call.1} parent=35 // pred_fallthru
          _
      $region36: #{tpu_custom_call.1} parent=5 // pred_fallthru
        _
      %p1492 = scmp.le.s32.totalorder 2, %s15
      // Predicated region
      $region49: #{tpu_custom_call.1} parent=5 // pred_check
        %p1493 = pneg %p1492
      $region50: #{tpu_custom_call.1} parent=5 // pred_check_branch
        %1495 = sbr.rel (%p1493) target = $region52
      $region51: #{tpu_custom_call.1} parent=5 // pred_region
        %s1496 = ssub.s32 %s15, 2
        // Predicated region
        $region53: #{tpu_custom_call.1} parent=51 // pred_check
          %p1497 = pneg %p163
        $region54: #{tpu_custom_call.1} parent=51 // pred_check_branch
          %1499 = sbr.rel (%p1497) target = $region56
        $region55: #{tpu_custom_call.1} parent=51 // pred_region
          %s1500 = smul.u32 8, %s27
          %p1501 = scmp.lt.s32.totalorder %s26, 1
          %s1502 = scalar_select %p1501, %s26, 1
          %p1503 = scmp.lt.s32.totalorder %s1500, 31
          %s1504 = scalar_select %p1503, %s1500, 31
          %s1505 = smul.addr %s1502, 32
          %s1506 = sadd.s32 %s1504, %s1505
          %s1507 = smul.addr %s1506, 8
          %s1508 = scalar_lea.vmem %s4, %s1507
        $region56: #{tpu_custom_call.1} parent=51 // pred_fallthru
          _
        // Predicated region
        $region57: #{tpu_custom_call.1} parent=51 // pred_check
          %p1509 = pneg %p189
        $region58: #{tpu_custom_call.1} parent=51 // pred_check_branch
          %1511 = sbr.rel (%p1509) target = $region60
        $region59: #{tpu_custom_call.1} parent=51 // pred_region
          %s1512 = sand.u32 %s174, 1
          %s1513 = scalar_lea.sflag [#allocation3], %s1512
          %s1514 = sand.u32 %s174, 1
          %s1515 = smul.addr %s1514, 2
          %s1516 = scalar_lea.vmem [#allocation2], %s1515
          %1518 = dma.done %s1513, 32
        $region60: #{tpu_custom_call.1} parent=51 // pred_fallthru
          _
      $region52: #{tpu_custom_call.1} parent=5 // pred_fallthru
        _
    $region6: #{tpu_custom_call.1} parent=1 // loop_footer
      %s19 = sadd.s32 1, %s15
    $region7: #{tpu_custom_call.1} parent=1 // loop_footer_branch
      %14 = sbr.rel target = $region3
    $region8: #{tpu_custom_call.1} parent=1 // loop_exit
      _
    %1519 = vsyncpa [#allocation3], 1
    %s1520 = scalar_lea.sflag [#allocation3], 1
    %1521 = vsyncpa %s1520, 1

</llo_original>
